<compile_context>
chip_gen: v7x
topology: tpu7x:2x2x1
jax: 0.10.0
libtpu: 0.0.40
codegen_flags: <defaults>
</compile_context>

<pallas_src>
import functools

import jax
import jax.numpy as jnp
from jax.experimental import pallas as pl
from jax.experimental.pallas import tpu as pltpu

# Explicit so kernel numerics do not depend on ambient matmul-precision config.
_MM_PRECISION = jax.lax.Precision.HIGHEST


# --------------------------------------------------------------------------
# Small helpers
# --------------------------------------------------------------------------
def _round_up(n, m):
    return -(-n // m) * m


def _lane_pad(n):
    """Round an output lane width up to a multiple of 128 (lane-dense stores)."""
    return _round_up(n, 128)


def _block_diag(mats):
    """Block-diagonal stack of 2-D matrices (built once at init time)."""
    rows = sum(m.shape[0] for m in mats)
    cols = sum(m.shape[1] for m in mats)
    out = jnp.zeros((rows, cols), mats[0].dtype)
    r = c = 0
    for m in mats:
        out = out.at[r:r + m.shape[0], c:c + m.shape[1]].set(m)
        r += m.shape[0]
        c += m.shape[1]
    return out


def _dot(a, w):
    # Cast activation to the weight dtype (bf16 fast path if enabled),
    # accumulate in f32 on the MXU.
    return jnp.dot(a.astype(w.dtype), w,
                   preferred_element_type=jnp.float32,
                   precision=_MM_PRECISION)


def _const_spec(shape):
    nd = len(shape)
    return pl.BlockSpec(shape, lambda i, _nd=nd: (0,) * _nd)


# --------------------------------------------------------------------------
# Fused Pallas kernel
# --------------------------------------------------------------------------
def _esmm_fused_kernel(*refs, num_expert, num_task, n_expert_extra,
                       n_task_layers, h_last, has_mmoe, has_task,
                       approx_softmax):
    it = iter(refs)
    x_ref = next(it)
    if has_mmoe:
        we1_ref = next(it)
        be1_ref = next(it)
        expert_rest = [(next(it), next(it)) for _ in range(n_expert_extra)]
        wg_ref = next(it)
        bg_ref = next(it)
    if has_task:
        task_layers = [(next(it), next(it)) for _ in range(n_task_layers)]
    o_ref = next(it)

    x = x_ref[...]

    if has_mmoe:
        # Expert layer 1: experts share x, so the E first layers fuse into ONE
        # (TB, K) @ (K, E*H1) MXU matmul; h stays lane-concatenated.
        h = jnp.maximum(_dot(x, we1_ref[...]) + be1_ref[...], 0.0)
        # Expert layers >= 2: block-diagonal weights keep h concatenated, so
        # each layer is one matmul instead of E tiny ones (no lane extracts).
        for w_ref, b_ref in expert_rest:
            h = jnp.maximum(_dot(h, w_ref[...]) + b_ref[...], 0.0)

        # All T gate projections fused into one (TB, K) @ (K, T*E) matmul.
        g = _dot(x, wg_ref[...]) + bg_ref[...]

        # Slice expert segments ONCE (E slices), reused across all tasks.
        h_e = [h[:, e * h_last:(e + 1) * h_last] for e in range(num_expert)]

        task_in = []
        for t in range(num_task):
            # Per-task softmax over its E-wide logit segment (whole segment is
            # in-block, so reductions never see padded lanes).
            logits = g[:, t * num_expert:(t + 1) * num_expert]
            m = jnp.max(logits, axis=-1, keepdims=True)
            p = jnp.exp(logits - m)
            gate = p * pl.reciprocal(jnp.sum(p, axis=-1, keepdims=True),
                                     approx=approx_softmax)
            # Gated combine as E VPU multiply-accumulates (a length-E MXU
            # contraction would be ~1% MXU utilization + a layout shuffle).
            ti = gate[:, 0:1] * h_e[0]
            for e in range(1, num_expert):
                ti = ti + gate[:, e:e + 1] * h_e[e]
            task_in.append(ti)
        y = task_in[0] if num_task == 1 else jnp.concatenate(task_in, axis=-1)
    else:
        # No MMoE: every task sees the same input; replicate into one slab.
        y = x if num_task == 1 else jnp.concatenate([x] * num_task, axis=-1)

    if has_task:
        # Per-task MLPs as block-diagonal matmuls over the task slab.  The
        # last layer's weights are zero-padded, so y is already the lane-dense
        # (TB, out_pad) output slab -> one unmasked full-width store.
        for w_ref, b_ref in task_layers:
            y = jnp.maximum(_dot(y, w_ref[...]) + b_ref[...], 0.0)

    ow = o_ref.shape[-1]
    if y.shape[-1] < ow:          # only hit when there is no task MLP
        y = jnp.concatenate(
            [y, jnp.zeros((y.shape[0], ow - y.shape[-1]), y.dtype)], axis=-1)
    o_ref[...] = y.astype(o_ref.dtype)


def _choose_batch_tile(b8, batch_tile):
    """Pick a multiple-of-8 batch tile.

    Prefers (a) tiles that divide the 8-rounded batch (no wrapper-side pad copy)
    and (b) >= 2 grid steps so both v7x TensorCores get work; falls back to a
    padded even split when only tiny divisors exist.
    """
    cap = min(_round_up(max(batch_tile, 8), 8), b8)
    if b8 >= 16:  # keep >= 2 "parallel" grid steps (v7x has 2 TCs per chip)
        cap = min(cap, _round_up(b8 // 2, 8))
    cap = max(cap, 8)

    tb = 8
    t = 8
    while t <= cap:               # largest multiple-of-8 tile dividing b8
        if b8 % t == 0:
            tb = t
        t += 8
    if tb * 4 < cap:              # only tiny divisors -> accept a small pad
        steps = -(-b8 // cap)
        tb = _round_up(-(-b8 // steps), 8)
    return tb


def esmm_fused_forward(x, stacked_mmoe, stacked_task, *, num_task, num_expert,
                       h_last, per_task_dim, batch_tile=512,
                       approx_softmax=False):
    """Runs the whole ESMM forward in one pallas_call; returns T (B, D) arrays."""
    B, K = x.shape
    b8 = _round_up(B, 8)
    TB = _choose_batch_tile(b8, batch_tile)
    b_pad = _round_up(b8, TB)
    if b_pad != B:
        x = jnp.pad(x, ((0, b_pad - B), (0, 0)))

    has_mmoe = stacked_mmoe is not None
    has_task = stacked_task is not None

    inputs = [x]
    in_specs = [pl.BlockSpec((TB, K), lambda i: (i, 0))]
    n_expert_extra = 0
    n_task_layers = 0

    if has_mmoe:
        we1, be1, rest, wg, bg = stacked_mmoe
        inputs += [we1, be1]
        in_specs += [_const_spec(we1.shape), _const_spec(be1.shape)]
        for wj, bj in rest:
            inputs += [wj, bj]
            in_specs += [_const_spec(wj.shape), _const_spec(bj.shape)]
        n_expert_extra = len(rest)
        inputs += [wg, bg]
        in_specs += [_const_spec(wg.shape), _const_spec(bg.shape)]

    if has_task:
        for wj, bj in stacked_task:
            inputs += [wj, bj]
            in_specs += [_const_spec(wj.shape), _const_spec(bj.shape)]
        n_task_layers = len(stacked_task)

    out_width = num_task * per_task_dim
    out_pad = _lane_pad(out_width)       # lane-dense output store

    kernel = functools.partial(
        _esmm_fused_kernel,
        num_expert=num_expert, num_task=num_task,
        n_expert_extra=n_expert_extra, n_task_layers=n_task_layers,
        h_last=h_last, has_mmoe=has_mmoe, has_task=has_task,
        approx_softmax=approx_softmax)

    out = pl.pallas_call(
        kernel,
        out_shape=jax.ShapeDtypeStruct((b_pad, out_pad), jnp.float32),
        grid=(b_pad // TB,),
        in_specs=in_specs,
        out_specs=pl.BlockSpec((TB, out_pad), lambda i: (i, 0)),
        compiler_params=pltpu.CompilerParams(
            dimension_semantics=("parallel",)),   # megacore split on v7x
    )(*inputs)

    return [out[:B, t * per_task_dim:(t + 1) * per_task_dim]
            for t in range(num_task)]


# --------------------------------------------------------------------------
# Parameter construction (deterministic, synthetic)
# --------------------------------------------------------------------------
def _init_linear(key, fan_in, fan_out):
    kw, kb = jax.random.split(key)
    scale = 1.0 / jnp.sqrt(jnp.float32(fan_in))
    w = jax.random.uniform(kw, (fan_in, fan_out), jnp.float32, -scale, scale)
    b = jax.random.uniform(kb, (fan_out,), jnp.float32, -scale, scale)
    return {"w": w, "b": b}


def _init_mlp(key, in_features, hidden_units):
    params = []
    dims = [in_features] + list(hidden_units)
    keys = jax.random.split(key, len(hidden_units))
    for i in range(len(hidden_units)):
        params.append(_init_linear(keys[i], dims[i], dims[i + 1]))
    return params


# --------------------------------------------------------------------------
# ESMM module (Pallas-backed forward)
# --------------------------------------------------------------------------
class ESMM:
    def __init__(self, in_features, num_task, mmoe=None, task_mlp=None,
                 key=None, weight_dtype=jnp.float32, approx_softmax=False):
        # weight_dtype=jnp.bfloat16 enables the native MXU bf16 path on
        # v5e/v6e/v7x; default f32 keeps strict PyTorch-f32 numerics.
        if key is None:
            key = jax.random.PRNGKey(0)
        self.num_task = num_task
        self.output_dim = in_features
        self.mmoe = None
        self.task_mlps = None
        self._stacked_mmoe = None
        self._stacked_task = None
        self._num_expert = 0
        self._h_last = 0
        self._approx_softmax = approx_softmax

        k_mmoe, k_task = jax.random.split(key)

        if mmoe is not None:
            num_expert = mmoe["num_expert"]
            expert_hidden = list(mmoe["expert_mlp"]["hidden_units"])
            k_exp, k_gate = jax.random.split(k_mmoe)
            exp_keys = jax.random.split(k_exp, num_expert)
            gate_keys = jax.random.split(k_gate, num_task)
            experts = [_init_mlp(exp_keys[e], in_features, expert_hidden)
                       for e in range(num_expert)]
            gates = [_init_linear(gate_keys[t], in_features, num_expert)
                     for t in range(num_task)]
            self.mmoe = {"num_expert": num_expert,
                         "experts": experts, "gates": gates}
            self._num_expert = num_expert
            self._h_last = expert_hidden[-1]

            # Pre-stacked weights for the fused kernel (built once at init).
            # Layer 1: experts share the input -> concat along output lanes.
            we1 = jnp.concatenate(
                [experts[e][0]["w"] for e in range(num_expert)],
                axis=1).astype(weight_dtype)
            be1 = jnp.concatenate(
                [experts[e][0]["b"] for e in range(num_expert)]).reshape(1, -1)
            # Layers >= 2: block-diagonal so the kernel keeps h concatenated.
            rest = []
            for j in range(1, len(expert_hidden)):
                wj = _block_diag(
                    [experts[e][j]["w"] for e in range(num_expert)]
                ).astype(weight_dtype)
                bj = jnp.concatenate(
                    [experts[e][j]["b"] for e in range(num_expert)]
                ).reshape(1, -1)
                rest.append((wj, bj))
            # All T gate projections -> one (K, T*E) weight.
            wg = jnp.concatenate(
                [gates[t]["w"] for t in range(num_task)],
                axis=1).astype(weight_dtype)
            bg = jnp.concatenate(
                [gates[t]["b"] for t in range(num_task)]).reshape(1, -1)
            self._stacked_mmoe = (we1, be1, rest, wg, bg)

            in_features = expert_hidden[-1]
            self.output_dim = in_features

        if task_mlp is not None:
            task_hidden = list(task_mlp["hidden_units"])
            task_keys = jax.random.split(k_task, num_task)
            self.task_mlps = [_init_mlp(task_keys[t], in_features, task_hidden)
                              for t in range(num_task)]
            self.output_dim = task_hidden[-1]

            # Block-diagonal per-task MLP weights; last layer zero-padded so
            # the kernel emits a lane-dense (TB, out_pad) slab directly.
            out_width = num_task * task_hidden[-1]
            out_pad = _lane_pad(out_width)
            stacked = []
            n_layers = len(task_hidden)
            for j in range(n_layers):
                wj = _block_diag(
                    [self.task_mlps[t][j]["w"] for t in range(num_task)])
                bj = jnp.concatenate(
                    [self.task_mlps[t][j]["b"] for t in range(num_task)]
                ).reshape(1, -1)
                if j == n_layers - 1 and out_pad > out_width:
                    wj = jnp.pad(wj, ((0, 0), (0, out_pad - out_width)))
                    bj = jnp.pad(bj, ((0, 0), (0, out_pad - out_width)))
                stacked.append((wj.astype(weight_dtype), bj))
            self._stacked_task = stacked

    def forward(self, inputs):
        if self.mmoe is None and self.task_mlps is None:
            # (reference code has a `self.task_num` typo; semantics: replicate input)
            return [inputs] * self.num_task
        # TODO(synk): tzrec MLP BN/dropout variants are eval-time no-ops here
        # (Linear+ReLU only).
        return esmm_fused_forward(
            inputs, self._stacked_mmoe, self._stacked_task,
            num_task=self.num_task, num_expert=self._num_expert,
            h_last=self._h_last, per_task_dim=self.output_dim,
            approx_softmax=self._approx_softmax)


# --------------------------------------------------------------------------
# Pure-JAX reference for correctness check
# --------------------------------------------------------------------------
def _ref_mlp(params, x):
    for layer in params:
        x = jnp.maximum(x @ layer["w"] + layer["b"], 0.0)
    return x


def _ref_forward(model, inputs):
    if model.mmoe is not None:
        expert_outs = jnp.stack(
            [_ref_mlp(p, inputs) for p in model.mmoe["experts"]], axis=0)
        task_inputs = []
        for t in range(model.num_task):
            g = model.mmoe["gates"][t]
            gate = jax.nn.softmax(inputs @ g["w"] + g["b"], axis=-1)
            task_inputs.append(jnp.einsum("ebd,be->bd", expert_outs, gate))
    else:
        task_inputs = [inputs] * model.num_task
    if model.task_mlps is not None:
        return [_ref_mlp(model.task_mlps[t], task_inputs[t])
                for t in range(model.num_task)]
    return task_inputs


# --------------------------------------------------------------------------
if __name__ == "__main__":
    # Reference matmuls also run at highest precision so the comparison is
    # apples-to-apples with the kernel's explicit Precision.HIGHEST dots.
    jax.config.update("jax_default_matmul_precision", "highest")

    B = 8
    in_features = 32
    num_task = 2

    model = ESMM(
        in_features=in_features,
        num_task=num_task,
        mmoe={"expert_mlp": {"hidden_units": [32, 16]}, "num_expert": 3},
        task_mlp={"hidden_units": [16, 8]},
        key=jax.random.PRNGKey(42),
    )

    x = jax.random.normal(jax.random.PRNGKey(0), (B, in_features), jnp.float32)

    outs = model.forward(x)
    outs = [jax.block_until_ready(o) for o in outs]

    refs = _ref_forward(model, x)
    for o, r in zip(outs, refs):
        assert o.shape == (B, model.output_dim)
        assert jnp.allclose(o, r, atol=1e-4, rtol=1e-4), "mismatch vs JAX reference"

    print("KERNEL_OK")
</pallas_src>

<mosaic_0001>
module attributes {stable_mosaic.version = 11 : i64} {
  func.func @_esmm_fused_kernel(%arg0: i32, %arg1: memref<8x32xf32, #tpu.memory_space<vmem>>, %arg2: memref<32x96xf32, #tpu.memory_space<vmem>>, %arg3: memref<1x96xf32, #tpu.memory_space<vmem>>, %arg4: memref<96x48xf32, #tpu.memory_space<vmem>>, %arg5: memref<1x48xf32, #tpu.memory_space<vmem>>, %arg6: memref<32x6xf32, #tpu.memory_space<vmem>>, %arg7: memref<1x6xf32, #tpu.memory_space<vmem>>, %arg8: memref<32x32xf32, #tpu.memory_space<vmem>>, %arg9: memref<1x32xf32, #tpu.memory_space<vmem>>, %arg10: memref<32x128xf32, #tpu.memory_space<vmem>>, %arg11: memref<1x128xf32, #tpu.memory_space<vmem>>, %arg12: memref<8x128xf32, #tpu.memory_space<vmem>>) attributes {dimension_semantics = [#tpu.dimension_semantics<parallel>], iteration_bounds = array<i64: 1>, scalar_prefetch = 0 : i64, scratch_operands = 0 : i64, tpu.core_type = #tpu.core_type<tc>, window_params = [{transform_indices = @transform_0, window_bounds = array<i64: 8, 32>}, {pipeline_mode = #tpu.pipeline_mode<synchronous>, transform_indices = @transform_1, window_bounds = array<i64: 32, 96>}, {pipeline_mode = #tpu.pipeline_mode<synchronous>, transform_indices = @transform_2, window_bounds = array<i64: 1, 96>}, {pipeline_mode = #tpu.pipeline_mode<synchronous>, transform_indices = @transform_3, window_bounds = array<i64: 96, 48>}, {pipeline_mode = #tpu.pipeline_mode<synchronous>, transform_indices = @transform_4, window_bounds = array<i64: 1, 48>}, {pipeline_mode = #tpu.pipeline_mode<synchronous>, transform_indices = @transform_5, window_bounds = array<i64: 32, 6>}, {pipeline_mode = #tpu.pipeline_mode<synchronous>, transform_indices = @transform_6, window_bounds = array<i64: 1, 6>}, {pipeline_mode = #tpu.pipeline_mode<synchronous>, transform_indices = @transform_7, window_bounds = array<i64: 32, 32>}, {pipeline_mode = #tpu.pipeline_mode<synchronous>, transform_indices = @transform_8, window_bounds = array<i64: 1, 32>}, {pipeline_mode = #tpu.pipeline_mode<synchronous>, transform_indices = @transform_9, window_bounds = array<i64: 32, 128>}, {pipeline_mode = #tpu.pipeline_mode<synchronous>, transform_indices = @transform_10, window_bounds = array<i64: 1, 128>}, {transform_indices = @transform_11, window_bounds = array<i64: 8, 128>}]} {
    %c0 = arith.constant 0 : index
    %c0_0 = arith.constant 0 : index
    %0 = vector.load %arg1[%c0, %c0_0] : memref<8x32xf32, #tpu.memory_space<vmem>>, vector<8x32xf32>
    %c0_1 = arith.constant 0 : index
    %c0_2 = arith.constant 0 : index
    %1 = vector.load %arg2[%c0_1, %c0_2] : memref<32x96xf32, #tpu.memory_space<vmem>>, vector<32x96xf32>
    %cst = arith.constant dense<0.000000e+00> : vector<8x96xf32>
    %2 = tpu.matmul %0, %1, %cst {dimension_numbers = #tpu.dot_dimension_numbers<[1], [0], [0], [1], [0, 0, 1, 1], [], []>, precision = #tpu.contract_precision<fp32>} : vector<8x32xf32>, vector<32x96xf32>, vector<8x96xf32> -> vector<8x96xf32>
    %c0_3 = arith.constant 0 : index
    %c0_4 = arith.constant 0 : index
    %3 = vector.load %arg3[%c0_3, %c0_4] : memref<1x96xf32, #tpu.memory_space<vmem>>, vector<1x96xf32>
    %4 = vector.broadcast %3 : vector<1x96xf32> to vector<8x96xf32>
    %5 = arith.addf %2, %4 : vector<8x96xf32>
    %cst_5 = arith.constant 0.000000e+00 : f32
    %6 = vector.broadcast %cst_5 : f32 to vector<8x96xf32>
    %7 = arith.maximumf %5, %6 : vector<8x96xf32>
    %c0_6 = arith.constant 0 : index
    %c0_7 = arith.constant 0 : index
    %8 = vector.load %arg4[%c0_6, %c0_7] : memref<96x48xf32, #tpu.memory_space<vmem>>, vector<96x48xf32>
    %cst_8 = arith.constant dense<0.000000e+00> : vector<8x48xf32>
    %9 = tpu.matmul %7, %8, %cst_8 {dimension_numbers = #tpu.dot_dimension_numbers<[1], [0], [0], [1], [0, 0, 1, 1], [], []>, precision = #tpu.contract_precision<fp32>} : vector<8x96xf32>, vector<96x48xf32>, vector<8x48xf32> -> vector<8x48xf32>
    %c0_9 = arith.constant 0 : index
    %c0_10 = arith.constant 0 : index
    %10 = vector.load %arg5[%c0_9, %c0_10] : memref<1x48xf32, #tpu.memory_space<vmem>>, vector<1x48xf32>
    %11 = vector.broadcast %10 : vector<1x48xf32> to vector<8x48xf32>
    %12 = arith.addf %9, %11 : vector<8x48xf32>
    %cst_11 = arith.constant 0.000000e+00 : f32
    %13 = vector.broadcast %cst_11 : f32 to vector<8x48xf32>
    %14 = arith.maximumf %12, %13 : vector<8x48xf32>
    %c0_12 = arith.constant 0 : index
    %c0_13 = arith.constant 0 : index
    %15 = vector.load %arg6[%c0_12, %c0_13] : memref<32x6xf32, #tpu.memory_space<vmem>>, vector<32x6xf32>
    %cst_14 = arith.constant dense<0.000000e+00> : vector<8x6xf32>
    %16 = tpu.matmul %0, %15, %cst_14 {dimension_numbers = #tpu.dot_dimension_numbers<[1], [0], [0], [1], [0, 0, 1, 1], [], []>, precision = #tpu.contract_precision<fp32>} : vector<8x32xf32>, vector<32x6xf32>, vector<8x6xf32> -> vector<8x6xf32>
    %c0_15 = arith.constant 0 : index
    %c0_16 = arith.constant 0 : index
    %17 = vector.load %arg7[%c0_15, %c0_16] : memref<1x6xf32, #tpu.memory_space<vmem>>, vector<1x6xf32>
    %18 = vector.broadcast %17 : vector<1x6xf32> to vector<8x6xf32>
    %19 = arith.addf %16, %18 : vector<8x6xf32>
    %20 = vector.extract_strided_slice %14 {offsets = [0, 0], sizes = [8, 16], strides = [1, 1]} : vector<8x48xf32> to vector<8x16xf32>
    %21 = vector.extract_strided_slice %14 {offsets = [0, 16], sizes = [8, 16], strides = [1, 1]} : vector<8x48xf32> to vector<8x16xf32>
    %22 = vector.extract_strided_slice %14 {offsets = [0, 32], sizes = [8, 16], strides = [1, 1]} : vector<8x48xf32> to vector<8x16xf32>
    %23 = vector.extract_strided_slice %19 {offsets = [0, 0], sizes = [8, 3], strides = [1, 1]} : vector<8x6xf32> to vector<8x3xf32>
    %cst_17 = arith.constant dense<0xFF800000> : vector<8xf32>
    %24 = vector.multi_reduction <maximumf>, %23, %cst_17 [1] : vector<8x3xf32> to vector<8xf32>
    %25 = vector.shape_cast %24 : vector<8xf32> to vector<8x1xf32>
    %26 = vector.broadcast %25 : vector<8x1xf32> to vector<8x3xf32>
    %27 = arith.subf %23, %26 : vector<8x3xf32>
    %28 = math.exp %27 : vector<8x3xf32>
    %cst_18 = arith.constant dense<0.000000e+00> : vector<8xf32>
    %29 = vector.multi_reduction <add>, %28, %cst_18 [1] : vector<8x3xf32> to vector<8xf32>
    %30 = vector.shape_cast %29 : vector<8xf32> to vector<8x1xf32>
    %31 = tpu.reciprocal %30 : vector<8x1xf32> -> vector<8x1xf32>
    %32 = vector.broadcast %31 : vector<8x1xf32> to vector<8x3xf32>
    %33 = arith.mulf %28, %32 : vector<8x3xf32>
    %34 = vector.extract_strided_slice %33 {offsets = [0, 0], sizes = [8, 1], strides = [1, 1]} : vector<8x3xf32> to vector<8x1xf32>
    %35 = vector.broadcast %34 : vector<8x1xf32> to vector<8x16xf32>
    %36 = arith.mulf %35, %20 : vector<8x16xf32>
    %37 = vector.extract_strided_slice %33 {offsets = [0, 1], sizes = [8, 1], strides = [1, 1]} : vector<8x3xf32> to vector<8x1xf32>
    %38 = vector.broadcast %37 : vector<8x1xf32> to vector<8x16xf32>
    %39 = arith.mulf %38, %21 : vector<8x16xf32>
    %40 = arith.addf %36, %39 : vector<8x16xf32>
    %41 = vector.extract_strided_slice %33 {offsets = [0, 2], sizes = [8, 1], strides = [1, 1]} : vector<8x3xf32> to vector<8x1xf32>
    %42 = vector.broadcast %41 : vector<8x1xf32> to vector<8x16xf32>
    %43 = arith.mulf %42, %22 : vector<8x16xf32>
    %44 = arith.addf %40, %43 : vector<8x16xf32>
    %45 = vector.extract_strided_slice %19 {offsets = [0, 3], sizes = [8, 3], strides = [1, 1]} : vector<8x6xf32> to vector<8x3xf32>
    %cst_19 = arith.constant dense<0xFF800000> : vector<8xf32>
    %46 = vector.multi_reduction <maximumf>, %45, %cst_19 [1] : vector<8x3xf32> to vector<8xf32>
    %47 = vector.shape_cast %46 : vector<8xf32> to vector<8x1xf32>
    %48 = vector.broadcast %47 : vector<8x1xf32> to vector<8x3xf32>
    %49 = arith.subf %45, %48 : vector<8x3xf32>
    %50 = math.exp %49 : vector<8x3xf32>
    %cst_20 = arith.constant dense<0.000000e+00> : vector<8xf32>
    %51 = vector.multi_reduction <add>, %50, %cst_20 [1] : vector<8x3xf32> to vector<8xf32>
    %52 = vector.shape_cast %51 : vector<8xf32> to vector<8x1xf32>
    %53 = tpu.reciprocal %52 : vector<8x1xf32> -> vector<8x1xf32>
    %54 = vector.broadcast %53 : vector<8x1xf32> to vector<8x3xf32>
    %55 = arith.mulf %50, %54 : vector<8x3xf32>
    %56 = vector.extract_strided_slice %55 {offsets = [0, 0], sizes = [8, 1], strides = [1, 1]} : vector<8x3xf32> to vector<8x1xf32>
    %57 = vector.broadcast %56 : vector<8x1xf32> to vector<8x16xf32>
    %58 = arith.mulf %57, %20 : vector<8x16xf32>
    %59 = vector.extract_strided_slice %55 {offsets = [0, 1], sizes = [8, 1], strides = [1, 1]} : vector<8x3xf32> to vector<8x1xf32>
    %60 = vector.broadcast %59 : vector<8x1xf32> to vector<8x16xf32>
    %61 = arith.mulf %60, %21 : vector<8x16xf32>
    %62 = arith.addf %58, %61 : vector<8x16xf32>
    %63 = vector.extract_strided_slice %55 {offsets = [0, 2], sizes = [8, 1], strides = [1, 1]} : vector<8x3xf32> to vector<8x1xf32>
    %64 = vector.broadcast %63 : vector<8x1xf32> to vector<8x16xf32>
    %65 = arith.mulf %64, %22 : vector<8x16xf32>
    %66 = arith.addf %62, %65 : vector<8x16xf32>
    %67 = tpu.concatenate %44, %66 in 1 : vector<8x16xf32>, vector<8x16xf32> -> vector<8x32xf32>
    %c0_21 = arith.constant 0 : index
    %c0_22 = arith.constant 0 : index
    %68 = vector.load %arg8[%c0_21, %c0_22] : memref<32x32xf32, #tpu.memory_space<vmem>>, vector<32x32xf32>
    %cst_23 = arith.constant dense<0.000000e+00> : vector<8x32xf32>
    %69 = tpu.matmul %67, %68, %cst_23 {dimension_numbers = #tpu.dot_dimension_numbers<[1], [0], [0], [1], [0, 0, 1, 1], [], []>, precision = #tpu.contract_precision<fp32>} : vector<8x32xf32>, vector<32x32xf32>, vector<8x32xf32> -> vector<8x32xf32>
    %c0_24 = arith.constant 0 : index
    %c0_25 = arith.constant 0 : index
    %70 = vector.load %arg9[%c0_24, %c0_25] : memref<1x32xf32, #tpu.memory_space<vmem>>, vector<1x32xf32>
    %71 = vector.broadcast %70 : vector<1x32xf32> to vector<8x32xf32>
    %72 = arith.addf %69, %71 : vector<8x32xf32>
    %cst_26 = arith.constant 0.000000e+00 : f32
    %73 = vector.broadcast %cst_26 : f32 to vector<8x32xf32>
    %74 = arith.maximumf %72, %73 : vector<8x32xf32>
    %c0_27 = arith.constant 0 : index
    %c0_28 = arith.constant 0 : index
    %75 = vector.load %arg10[%c0_27, %c0_28] : memref<32x128xf32, #tpu.memory_space<vmem>>, vector<32x128xf32>
    %cst_29 = arith.constant dense<0.000000e+00> : vector<8x128xf32>
    %76 = tpu.matmul %74, %75, %cst_29 {dimension_numbers = #tpu.dot_dimension_numbers<[1], [0], [0], [1], [0, 0, 1, 1], [], []>, precision = #tpu.contract_precision<fp32>} : vector<8x32xf32>, vector<32x128xf32>, vector<8x128xf32> -> vector<8x128xf32>
    %c0_30 = arith.constant 0 : index
    %c0_31 = arith.constant 0 : index
    %77 = vector.load %arg11[%c0_30, %c0_31] : memref<1x128xf32, #tpu.memory_space<vmem>>, vector<1x128xf32>
    %78 = vector.broadcast %77 : vector<1x128xf32> to vector<8x128xf32>
    %79 = arith.addf %76, %78 : vector<8x128xf32>
    %cst_32 = arith.constant 0.000000e+00 : f32
    %80 = vector.broadcast %cst_32 : f32 to vector<8x128xf32>
    %81 = arith.maximumf %79, %80 : vector<8x128xf32>
    %c0_33 = arith.constant 0 : index
    %c0_34 = arith.constant 0 : index
    %82 = vector.load %arg12[%c0_33, %c0_34] : memref<8x128xf32, #tpu.memory_space<vmem>>, vector<8x128xf32>
    tpu.vector_store %arg12[%c0_33, %c0_34], %81 {strides = array<i32>} : memref<8x128xf32, #tpu.memory_space<vmem>>, vector<8x128xf32>,
    return
  }
  func.func @transform_0(%arg0: i32) -> (i32, i32) {
    %c0_i32 = arith.constant 0 : i32
    %c0_i32_0 = arith.constant 0 : i32
    return %arg0, %c0_i32 : i32, i32
  }
  func.func @transform_1(%arg0: i32) -> (i32, i32) {
    %c0_i32 = arith.constant 0 : i32
    %c0_i32_0 = arith.constant 0 : i32
    %c0_i32_1 = arith.constant 0 : i32
    return %c0_i32, %c0_i32_0 : i32, i32
  }
  func.func @transform_2(%arg0: i32) -> (i32, i32) {
    %c0_i32 = arith.constant 0 : i32
    %c0_i32_0 = arith.constant 0 : i32
    %c0_i32_1 = arith.constant 0 : i32
    return %c0_i32, %c0_i32_0 : i32, i32
  }
  func.func @transform_3(%arg0: i32) -> (i32, i32) {
    %c0_i32 = arith.constant 0 : i32
    %c0_i32_0 = arith.constant 0 : i32
    %c0_i32_1 = arith.constant 0 : i32
    return %c0_i32, %c0_i32_0 : i32, i32
  }
  func.func @transform_4(%arg0: i32) -> (i32, i32) {
    %c0_i32 = arith.constant 0 : i32
    %c0_i32_0 = arith.constant 0 : i32
    %c0_i32_1 = arith.constant 0 : i32
    return %c0_i32, %c0_i32_0 : i32, i32
  }
  func.func @transform_5(%arg0: i32) -> (i32, i32) {
    %c0_i32 = arith.constant 0 : i32
    %c0_i32_0 = arith.constant 0 : i32
    %c0_i32_1 = arith.constant 0 : i32
    return %c0_i32, %c0_i32_0 : i32, i32
  }
  func.func @transform_6(%arg0: i32) -> (i32, i32) {
    %c0_i32 = arith.constant 0 : i32
    %c0_i32_0 = arith.constant 0 : i32
    %c0_i32_1 = arith.constant 0 : i32
    return %c0_i32, %c0_i32_0 : i32, i32
  }
  func.func @transform_7(%arg0: i32) -> (i32, i32) {
    %c0_i32 = arith.constant 0 : i32
    %c0_i32_0 = arith.constant 0 : i32
    %c0_i32_1 = arith.constant 0 : i32
    return %c0_i32, %c0_i32_0 : i32, i32
  }
  func.func @transform_8(%arg0: i32) -> (i32, i32) {
    %c0_i32 = arith.constant 0 : i32
    %c0_i32_0 = arith.constant 0 : i32
    %c0_i32_1 = arith.constant 0 : i32
    return %c0_i32, %c0_i32_0 : i32, i32
  }
  func.func @transform_9(%arg0: i32) -> (i32, i32) {
    %c0_i32 = arith.constant 0 : i32
    %c0_i32_0 = arith.constant 0 : i32
    %c0_i32_1 = arith.constant 0 : i32
    return %c0_i32, %c0_i32_0 : i32, i32
  }
  func.func @transform_10(%arg0: i32) -> (i32, i32) {
    %c0_i32 = arith.constant 0 : i32
    %c0_i32_0 = arith.constant 0 : i32
    %c0_i32_1 = arith.constant 0 : i32
    return %c0_i32, %c0_i32_0 : i32, i32
  }
  func.func @transform_11(%arg0: i32) -> (i32, i32) {
    %c0_i32 = arith.constant 0 : i32
    %c0_i32_0 = arith.constant 0 : i32
    return %arg0, %c0_i32 : i32, i32
  }
}

</mosaic_0001>

<llo_original>
// kernel: tpu_custom_call.1
$region0: #{tpu_custom_call.1}
  #allocation0 [shape = 'u32[]', space=smem, size = 0x4, offset = 0x4, fixed_abs, tag = 'smem constant byte address 0x4 - core index']
  #allocation1 [shape = 'u32[144,128]{1,0:T(1,128)}', space=vmem, size = 0x12000, scoped, tag = 'internal scratch']
  %s0 = inlined_call_operand.vmem [shape: f32[8,32], index: 0, kind: input, shape index: {}]
  %s1 = inlined_call_operand.vmem [shape: f32[32,96], index: 1, kind: input, shape index: {}]
  %s2 = inlined_call_operand.vmem [shape: f32[1,96], index: 2, kind: input, shape index: {}]
  %s3 = inlined_call_operand.vmem [shape: f32[96,48], index: 3, kind: input, shape index: {}]
  %s4 = inlined_call_operand.vmem [shape: f32[1,48], index: 4, kind: input, shape index: {}]
  %s5 = inlined_call_operand.vmem [shape: f32[32,6], index: 5, kind: input, shape index: {}]
  %s6 = inlined_call_operand.vmem [shape: f32[1,6], index: 6, kind: input, shape index: {}]
  %s7 = inlined_call_operand.vmem [shape: f32[32,32], index: 7, kind: input, shape index: {}]
  %s8 = inlined_call_operand.vmem [shape: f32[1,32], index: 8, kind: input, shape index: {}]
  %s9 = inlined_call_operand.vmem [shape: f32[32,128], index: 9, kind: input, shape index: {}]
  %s10 = inlined_call_operand.vmem [shape: f32[1,128], index: 10, kind: input, shape index: {}]
  %s11 = inlined_call_operand.hbm [shape: f32[8,128], index: 11, kind: output, shape index: {}]
  %s12 = sld [smem:[#allocation0]]
  $region54: #{tpu_custom_call.1} parent=0
    _
  %s14 = ssub.s32 1, %s12
  %s15 = scalar_select 0, %s14, %s12
  $region1: #{tpu_custom_call.1} parent=0
    #allocation2 [shape = 'u8[4096]{0}', space=vmem, size = 0x1000, scoped, tag = 'output window, operand 0, single buffered']
    #allocation3 [shape = 's32[1]{0}', space=sflag, size = 0x4, scoped, tag = 'scoped memory for tpu_custom_call.1']
    %16 = vsyncpa [#allocation3], 0
    // Predicated region
    $region2: #{tpu_custom_call.1} parent=1 // pred_check
      _
    $region3: #{tpu_custom_call.1} parent=1 // pred_check_branch
      %18 = sbr.rel (0) target = $region5
    $region4: #{tpu_custom_call.1} parent=1 // pred_region
      _
    $region5: #{tpu_custom_call.1} parent=1 // pred_fallthru
      _
    // Predicated region
    $region6: #{tpu_custom_call.1} parent=1 // pred_check
      _
    $region7: #{tpu_custom_call.1} parent=1 // pred_check_branch
      %20 = sbr.rel (0) target = $region9
    $region8: #{tpu_custom_call.1} parent=1 // pred_region
      _
    $region9: #{tpu_custom_call.1} parent=1 // pred_fallthru
      _
    // Predicated region
    $region10: #{tpu_custom_call.1} parent=1 // pred_check
      _
    $region11: #{tpu_custom_call.1} parent=1 // pred_check_branch
      %22 = sbr.rel (0) target = $region13
    $region12: #{tpu_custom_call.1} parent=1 // pred_region
      _
    $region13: #{tpu_custom_call.1} parent=1 // pred_fallthru
      _
    // Predicated region
    $region14: #{tpu_custom_call.1} parent=1 // pred_check
      _
    $region15: #{tpu_custom_call.1} parent=1 // pred_check_branch
      %24 = sbr.rel (0) target = $region17
    $region16: #{tpu_custom_call.1} parent=1 // pred_region
      _
    $region17: #{tpu_custom_call.1} parent=1 // pred_fallthru
      _
    // Predicated region
    $region18: #{tpu_custom_call.1} parent=1 // pred_check
      _
    $region19: #{tpu_custom_call.1} parent=1 // pred_check_branch
      %26 = sbr.rel (0) target = $region21
    $region20: #{tpu_custom_call.1} parent=1 // pred_region
      _
    $region21: #{tpu_custom_call.1} parent=1 // pred_fallthru
      _
    // Predicated region
    $region22: #{tpu_custom_call.1} parent=1 // pred_check
      _
    $region23: #{tpu_custom_call.1} parent=1 // pred_check_branch
      %28 = sbr.rel (0) target = $region25
    $region24: #{tpu_custom_call.1} parent=1 // pred_region
      _
    $region25: #{tpu_custom_call.1} parent=1 // pred_fallthru
      _
    // Predicated region
    $region26: #{tpu_custom_call.1} parent=1 // pred_check
      _
    $region27: #{tpu_custom_call.1} parent=1 // pred_check_branch
      %30 = sbr.rel (0) target = $region29
    $region28: #{tpu_custom_call.1} parent=1 // pred_region
      _
    $region29: #{tpu_custom_call.1} parent=1 // pred_fallthru
      _
    // Predicated region
    $region30: #{tpu_custom_call.1} parent=1 // pred_check
      _
    $region31: #{tpu_custom_call.1} parent=1 // pred_check_branch
      %32 = sbr.rel (0) target = $region33
    $region32: #{tpu_custom_call.1} parent=1 // pred_region
      _
    $region33: #{tpu_custom_call.1} parent=1 // pred_fallthru
      _
    // Predicated region
    $region34: #{tpu_custom_call.1} parent=1 // pred_check
      _
    $region35: #{tpu_custom_call.1} parent=1 // pred_check_branch
      %34 = sbr.rel (0) target = $region37
    $region36: #{tpu_custom_call.1} parent=1 // pred_region
      _
    $region37: #{tpu_custom_call.1} parent=1 // pred_fallthru
      _
    // Predicated region
    $region38: #{tpu_custom_call.1} parent=1 // pred_check
      _
    $region39: #{tpu_custom_call.1} parent=1 // pred_check_branch
      %36 = sbr.rel (0) target = $region41
    $region40: #{tpu_custom_call.1} parent=1 // pred_region
      _
    $region41: #{tpu_custom_call.1} parent=1 // pred_fallthru
      _
    // Predicated region
    $region42: #{tpu_custom_call.1} parent=1 // pred_check
      _
    $region43: #{tpu_custom_call.1} parent=1 // pred_check_branch
      %38 = sbr.rel (0) target = $region45
    $region44: #{tpu_custom_call.1} parent=1 // pred_region
      _
    $region45: #{tpu_custom_call.1} parent=1 // pred_fallthru
      _
    %v39 = vld [vmem:[%s0] sm:$0xff]
    %v40 = vld [vmem:[%s1] sm:$0xff]
    %v41 = vld [vmem:[%s1 + $0x8] sm:$0xff]
    %v42 = vld [vmem:[%s1 + $0x10] sm:$0xff]
    %v43 = vld [vmem:[%s1 + $0x18] sm:$0xff]
    %v44 = vld [vmem:[%s2] sm:$0x1]
    %v46 = vlaneseq
    %v47 = vshrl.u32 %v46, 7
    %v48 = vsub.s32 0, %v47
    %v49 = vrot.slane %v44, %v48
    %vm51 = vcmask 261120
    %v53 = vsel %vm51, %v39, 0
    %55 = vmatprep.subr.mxu0 0.0
    %v56 = vand.u32 %v40, 4294901760
    %57 = vmatpush1.msra.mxu0 %v56
    %58 = vmatprep.subr.mxu0 0.0
    %v59 = vand.u32 %v41, 4294901760
    %60 = vmatpush1.msra.mxu0 %v59
    %61 = vmatprep.subr.mxu0 0.0
    %v62 = vand.u32 %v42, 4294901760
    %63 = vmatpush1.msra.mxu0 %v62
    %64 = vmatprep.subr.mxu0 0.0
    %v65 = vand.u32 %v43, 4294901760
    %66 = vmatpush1.msra.mxu0 %v65
    %67 = vmatprep.subr.mxu0 0.0
    %68 = vmatpush1.msra.mxu0 0.0
    %69 = vmatprep.subr.mxu0 0.0
    %70 = vmatpush1.msra.mxu0 0.0
    %71 = vmatprep.subr.mxu0 0.0
    %72 = vmatpush1.msra.mxu0 0.0
    %73 = vmatprep.subr.mxu0 0.0
    %74 = vmatpush1.msra.mxu0 0.0
    %75 = vmatprep.subr.mxu0 0.0
    %76 = vmatpush1.msra.mxu0 0.0
    %77 = vmatprep.subr.mxu0 0.0
    %78 = vmatpush1.msra.mxu0 0.0
    %79 = vmatprep.subr.mxu0 0.0
    %80 = vmatpush1.msra.mxu0 0.0
    %81 = vmatprep.subr.mxu0 0.0
    %82 = vmatpush1.msra.mxu0 0.0
    %83 = vmatprep.subr.mxu0 0.0
    %84 = vmatpush1.msra.mxu0 0.0
    %85 = vmatprep.subr.mxu0 0.0
    %86 = vmatpush1.msra.mxu0 0.0
    %87 = vmatprep.subr.mxu0 0.0
    %88 = vmatpush1.msra.mxu0 0.0
    %89 = vmatprep.subr.mxu0 0.0
    %90 = vmatpush1.msra.mxu0 0.0
    %91 = vmatprep.subr.mxu0 0.0
    %92 = vmatpush1.msra.mxu0 0.0
    %93 = vmatprep.subr.mxu0 0.0
    %94 = vmatpush1.msra.mxu0 0.0
    %95 = vmatprep.subr.mxu0 0.0
    %96 = vmatpush1.msra.mxu0 0.0
    %97 = vmatprep.subr.mxu0 0.0
    %98 = vmatpush1.msra.mxu0 0.0
    %99 = vmatprep.subr.mxu0 0.0
    %100 = vmatpush1.msra.mxu0 0.0
    %101 = vmatprep.subr.mxu0 0.0
    %102 = vmatpush1.msra.mxu0 0.0
    %103 = vmatprep.subr.mxu0 0.0
    %104 = vmatpush1.msra.mxu0 0.0
    %105 = vmatprep.subr.mxu0 0.0
    %106 = vmatpush1.msra.mxu0 0.0
    %107 = vmatprep.subr.mxu0 0.0
    %108 = vmatpush1.msra.mxu0 0.0
    %109 = vmatprep.subr.mxu0 0.0
    %110 = vmatpush1.msra.mxu0 0.0
    %111 = vmatprep.subr.mxu0 0.0
    %112 = vmatpush1.msra.mxu0 0.0
    %113 = vmatprep.subr.mxu0 0.0
    %114 = vmatpush1.msra.mxu0 0.0
    %115 = vmatprep.subr.mxu0 0.0
    %116 = vmatpush1.msra.mxu0 0.0
    %117 = vmatprep.subr.mxu0 0.0
    %118 = vmatpush1.msra.mxu0 0.0
    %119 = vmatprep.subr.mxu0 0.0
    %120 = vmatpush1.msra.mxu0 0.0
    %121 = vmatprep.subr.mxu0 0.0
    %122 = vmatpush1.msra.mxu0 0.0
    %123 = vmatprep.mubr.f32.mxu0 0.0
    %v124 = vand.u32 %v53, 4294901760
    %v125 = vsub.f32 %v53, %v124
    %v126 = vand.u32 %v125, 4294901760
    %v127 = vsub.f32 %v125, %v126
    %v128 = vand.u32 %v127, 4294901760
    %129 = vmatmul.mubr.f32.gmra.mrb[0].mxu0 %v128
    %v130 = vpop.f32.mrb[0].mxu0
    %v131 = vadd.f32 %v49, %v130
    %v132 = vpop.f32.mrb[0].mxu0
    %133 = vdwg.mxu0
    %134 = vmatprep.subr.mxu0 0.0
    %v135 = vand.u32 %v40, 4294901760
    %v136 = vsub.f32 %v40, %v135
    %v137 = vand.u32 %v136, 4294901760
    %v138 = vsub.f32 %v136, %v137
    %v139 = vand.u32 %v138, 4294901760
    %140 = vmatpush1.msra.mxu0 %v139
    %141 = vmatprep.subr.mxu0 0.0
    %v142 = vand.u32 %v41, 4294901760
    %v143 = vsub.f32 %v41, %v142
    %v144 = vand.u32 %v143, 4294901760
    %v145 = vsub.f32 %v143, %v144
    %v146 = vand.u32 %v145, 4294901760
    %147 = vmatpush1.msra.mxu0 %v146
    %148 = vmatprep.subr.mxu0 0.0
    %v149 = vand.u32 %v42, 4294901760
    %v150 = vsub.f32 %v42, %v149
    %v151 = vand.u32 %v150, 4294901760
    %v152 = vsub.f32 %v150, %v151
    %v153 = vand.u32 %v152, 4294901760
    %154 = vmatpush1.msra.mxu0 %v153
    %155 = vmatprep.subr.mxu0 0.0
    %v156 = vand.u32 %v43, 4294901760
    %v157 = vsub.f32 %v43, %v156
    %v158 = vand.u32 %v157, 4294901760
    %v159 = vsub.f32 %v157, %v158
    %v160 = vand.u32 %v159, 4294901760
    %161 = vmatpush1.msra.mxu0 %v160
    %162 = vmatprep.subr.mxu0 0.0
    %163 = vmatpush1.msra.mxu0 0.0
    %164 = vmatprep.subr.mxu0 0.0
    %165 = vmatpush1.msra.mxu0 0.0
    %166 = vmatprep.subr.mxu0 0.0
    %167 = vmatpush1.msra.mxu0 0.0
    %168 = vmatprep.subr.mxu0 0.0
    %169 = vmatpush1.msra.mxu0 0.0
    %170 = vmatprep.subr.mxu0 0.0
    %171 = vmatpush1.msra.mxu0 0.0
    %172 = vmatprep.subr.mxu0 0.0
    %173 = vmatpush1.msra.mxu0 0.0
    %174 = vmatprep.subr.mxu0 0.0
    %175 = vmatpush1.msra.mxu0 0.0
    %176 = vmatprep.subr.mxu0 0.0
    %177 = vmatpush1.msra.mxu0 0.0
    %178 = vmatprep.subr.mxu0 0.0
    %179 = vmatpush1.msra.mxu0 0.0
    %180 = vmatprep.subr.mxu0 0.0
    %181 = vmatpush1.msra.mxu0 0.0
    %182 = vmatprep.subr.mxu0 0.0
    %183 = vmatpush1.msra.mxu0 0.0
    %184 = vmatprep.subr.mxu0 0.0
    %185 = vmatpush1.msra.mxu0 0.0
    %186 = vmatprep.subr.mxu0 0.0
    %187 = vmatpush1.msra.mxu0 0.0
    %188 = vmatprep.subr.mxu0 0.0
    %189 = vmatpush1.msra.mxu0 0.0
    %190 = vmatprep.subr.mxu0 0.0
    %191 = vmatpush1.msra.mxu0 0.0
    %192 = vmatprep.subr.mxu0 0.0
    %193 = vmatpush1.msra.mxu0 0.0
    %194 = vmatprep.subr.mxu0 0.0
    %195 = vmatpush1.msra.mxu0 0.0
    %196 = vmatprep.subr.mxu0 0.0
    %197 = vmatpush1.msra.mxu0 0.0
    %198 = vmatprep.subr.mxu0 0.0
    %199 = vmatpush1.msra.mxu0 0.0
    %200 = vmatprep.subr.mxu0 0.0
    %201 = vmatpush1.msra.mxu0 0.0
    %202 = vmatprep.subr.mxu0 0.0
    %203 = vmatpush1.msra.mxu0 0.0
    %204 = vmatprep.subr.mxu0 0.0
    %205 = vmatpush1.msra.mxu0 0.0
    %206 = vmatprep.subr.mxu0 0.0
    %207 = vmatpush1.msra.mxu0 0.0
    %208 = vmatprep.subr.mxu0 0.0
    %209 = vmatpush1.msra.mxu0 0.0
    %210 = vmatprep.subr.mxu0 0.0
    %211 = vmatpush1.msra.mxu0 0.0
    %212 = vmatprep.subr.mxu0 0.0
    %213 = vmatpush1.msra.mxu0 0.0
    %214 = vmatprep.subr.mxu0 0.0
    %215 = vmatpush1.msra.mxu0 0.0
    %216 = vmatprep.subr.mxu0 0.0
    %217 = vmatpush1.msra.mxu0 0.0
    %218 = vmatprep.mubr.f32.mxu0 0.0
    %v219 = vand.u32 %v53, 4294901760
    %220 = vmatmul.mubr.f32.gmra.mrb[0].mxu0 %v219
    %v221 = vpop.f32.mrb[0].mxu0
    %v222 = vadd.f32 %v131, %v221
    %v223 = vpop.f32.mrb[0].mxu0
    %224 = vdwg.mxu0
    %225 = vmatprep.subr.mxu0 0.0
    %v226 = vand.u32 %v40, 4294901760
    %v227 = vsub.f32 %v40, %v226
    %228 = vmatpush1.msra.mxu0 %v227
    %229 = vmatprep.subr.mxu0 0.0
    %v230 = vand.u32 %v41, 4294901760
    %v231 = vsub.f32 %v41, %v230
    %232 = vmatpush1.msra.mxu0 %v231
    %233 = vmatprep.subr.mxu0 0.0
    %v234 = vand.u32 %v42, 4294901760
    %v235 = vsub.f32 %v42, %v234
    %236 = vmatpush1.msra.mxu0 %v235
    %237 = vmatprep.subr.mxu0 0.0
    %v238 = vand.u32 %v43, 4294901760
    %v239 = vsub.f32 %v43, %v238
    %240 = vmatpush1.msra.mxu0 %v239
    %241 = vmatprep.subr.mxu0 0.0
    %242 = vmatpush1.msra.mxu0 0.0
    %243 = vmatprep.subr.mxu0 0.0
    %244 = vmatpush1.msra.mxu0 0.0
    %245 = vmatprep.subr.mxu0 0.0
    %246 = vmatpush1.msra.mxu0 0.0
    %247 = vmatprep.subr.mxu0 0.0
    %248 = vmatpush1.msra.mxu0 0.0
    %249 = vmatprep.subr.mxu0 0.0
    %250 = vmatpush1.msra.mxu0 0.0
    %251 = vmatprep.subr.mxu0 0.0
    %252 = vmatpush1.msra.mxu0 0.0
    %253 = vmatprep.subr.mxu0 0.0
    %254 = vmatpush1.msra.mxu0 0.0
    %255 = vmatprep.subr.mxu0 0.0
    %256 = vmatpush1.msra.mxu0 0.0
    %257 = vmatprep.subr.mxu0 0.0
    %258 = vmatpush1.msra.mxu0 0.0
    %259 = vmatprep.subr.mxu0 0.0
    %260 = vmatpush1.msra.mxu0 0.0
    %261 = vmatprep.subr.mxu0 0.0
    %262 = vmatpush1.msra.mxu0 0.0
    %263 = vmatprep.subr.mxu0 0.0
    %264 = vmatpush1.msra.mxu0 0.0
    %265 = vmatprep.subr.mxu0 0.0
    %266 = vmatpush1.msra.mxu0 0.0
    %267 = vmatprep.subr.mxu0 0.0
    %268 = vmatpush1.msra.mxu0 0.0
    %269 = vmatprep.subr.mxu0 0.0
    %270 = vmatpush1.msra.mxu0 0.0
    %271 = vmatprep.subr.mxu0 0.0
    %272 = vmatpush1.msra.mxu0 0.0
    %273 = vmatprep.subr.mxu0 0.0
    %274 = vmatpush1.msra.mxu0 0.0
    %275 = vmatprep.subr.mxu0 0.0
    %276 = vmatpush1.msra.mxu0 0.0
    %277 = vmatprep.subr.mxu0 0.0
    %278 = vmatpush1.msra.mxu0 0.0
    %279 = vmatprep.subr.mxu0 0.0
    %280 = vmatpush1.msra.mxu0 0.0
    %281 = vmatprep.subr.mxu0 0.0
    %282 = vmatpush1.msra.mxu0 0.0
    %283 = vmatprep.subr.mxu0 0.0
    %284 = vmatpush1.msra.mxu0 0.0
    %285 = vmatprep.subr.mxu0 0.0
    %286 = vmatpush1.msra.mxu0 0.0
    %287 = vmatprep.subr.mxu0 0.0
    %288 = vmatpush1.msra.mxu0 0.0
    %289 = vmatprep.subr.mxu0 0.0
    %290 = vmatpush1.msra.mxu0 0.0
    %291 = vmatprep.subr.mxu0 0.0
    %292 = vmatpush1.msra.mxu0 0.0
    %293 = vmatprep.subr.mxu0 0.0
    %294 = vmatpush1.msra.mxu0 0.0
    %295 = vmatprep.subr.mxu0 0.0
    %296 = vmatpush1.msra.mxu0 0.0
    %297 = vmatprep.mubr.f32.mxu0 0.0
    %v298 = vand.u32 %v53, 4294901760
    %v299 = vsub.f32 %v53, %v298
    %300 = vmatmul.mubr.f32.gmra.mrb[0].mxu0 %v299
    %v301 = vpop.f32.mrb[0].mxu0
    %v302 = vadd.f32 %v222, %v301
    %v303 = vpop.f32.mrb[0].mxu0
    %304 = vdwg.mxu0
    %305 = vmatprep.subr.mxu0 0.0
    %v306 = vand.u32 %v40, 4294901760
    %307 = vmatpush1.msra.mxu0 %v306
    %308 = vmatprep.subr.mxu0 0.0
    %v309 = vand.u32 %v41, 4294901760
    %310 = vmatpush1.msra.mxu0 %v309
    %311 = vmatprep.subr.mxu0 0.0
    %v312 = vand.u32 %v42, 4294901760
    %313 = vmatpush1.msra.mxu0 %v312
    %314 = vmatprep.subr.mxu0 0.0
    %v315 = vand.u32 %v43, 4294901760
    %316 = vmatpush1.msra.mxu0 %v315
    %317 = vmatprep.subr.mxu0 0.0
    %318 = vmatpush1.msra.mxu0 0.0
    %319 = vmatprep.subr.mxu0 0.0
    %320 = vmatpush1.msra.mxu0 0.0
    %321 = vmatprep.subr.mxu0 0.0
    %322 = vmatpush1.msra.mxu0 0.0
    %323 = vmatprep.subr.mxu0 0.0
    %324 = vmatpush1.msra.mxu0 0.0
    %325 = vmatprep.subr.mxu0 0.0
    %326 = vmatpush1.msra.mxu0 0.0
    %327 = vmatprep.subr.mxu0 0.0
    %328 = vmatpush1.msra.mxu0 0.0
    %329 = vmatprep.subr.mxu0 0.0
    %330 = vmatpush1.msra.mxu0 0.0
    %331 = vmatprep.subr.mxu0 0.0
    %332 = vmatpush1.msra.mxu0 0.0
    %333 = vmatprep.subr.mxu0 0.0
    %334 = vmatpush1.msra.mxu0 0.0
    %335 = vmatprep.subr.mxu0 0.0
    %336 = vmatpush1.msra.mxu0 0.0
    %337 = vmatprep.subr.mxu0 0.0
    %338 = vmatpush1.msra.mxu0 0.0
    %339 = vmatprep.subr.mxu0 0.0
    %340 = vmatpush1.msra.mxu0 0.0
    %341 = vmatprep.subr.mxu0 0.0
    %342 = vmatpush1.msra.mxu0 0.0
    %343 = vmatprep.subr.mxu0 0.0
    %344 = vmatpush1.msra.mxu0 0.0
    %345 = vmatprep.subr.mxu0 0.0
    %346 = vmatpush1.msra.mxu0 0.0
    %347 = vmatprep.subr.mxu0 0.0
    %348 = vmatpush1.msra.mxu0 0.0
    %349 = vmatprep.subr.mxu0 0.0
    %350 = vmatpush1.msra.mxu0 0.0
    %351 = vmatprep.subr.mxu0 0.0
    %352 = vmatpush1.msra.mxu0 0.0
    %353 = vmatprep.subr.mxu0 0.0
    %354 = vmatpush1.msra.mxu0 0.0
    %355 = vmatprep.subr.mxu0 0.0
    %356 = vmatpush1.msra.mxu0 0.0
    %357 = vmatprep.subr.mxu0 0.0
    %358 = vmatpush1.msra.mxu0 0.0
    %359 = vmatprep.subr.mxu0 0.0
    %360 = vmatpush1.msra.mxu0 0.0
    %361 = vmatprep.subr.mxu0 0.0
    %362 = vmatpush1.msra.mxu0 0.0
    %363 = vmatprep.subr.mxu0 0.0
    %364 = vmatpush1.msra.mxu0 0.0
    %365 = vmatprep.subr.mxu0 0.0
    %366 = vmatpush1.msra.mxu0 0.0
    %367 = vmatprep.subr.mxu0 0.0
    %368 = vmatpush1.msra.mxu0 0.0
    %369 = vmatprep.subr.mxu0 0.0
    %370 = vmatpush1.msra.mxu0 0.0
    %371 = vmatprep.subr.mxu0 0.0
    %372 = vmatpush1.msra.mxu0 0.0
    %373 = vmatprep.mubr.f32.mxu0 0.0
    %v374 = vand.u32 %v53, 4294901760
    %v375 = vsub.f32 %v53, %v374
    %v376 = vand.u32 %v375, 4294901760
    %377 = vmatmul.mubr.f32.gmra.mrb[0].mxu0 %v376
    %v378 = vpop.f32.mrb[0].mxu0
    %v379 = vadd.f32 %v302, %v378
    %v380 = vpop.f32.mrb[0].mxu0
    %381 = vdwg.mxu0
    %382 = vmatprep.subr.mxu0 0.0
    %v383 = vand.u32 %v40, 4294901760
    %v384 = vsub.f32 %v40, %v383
    %v385 = vand.u32 %v384, 4294901760
    %386 = vmatpush1.msra.mxu0 %v385
    %387 = vmatprep.subr.mxu0 0.0
    %v388 = vand.u32 %v41, 4294901760
    %v389 = vsub.f32 %v41, %v388
    %v390 = vand.u32 %v389, 4294901760
    %391 = vmatpush1.msra.mxu0 %v390
    %392 = vmatprep.subr.mxu0 0.0
    %v393 = vand.u32 %v42, 4294901760
    %v394 = vsub.f32 %v42, %v393
    %v395 = vand.u32 %v394, 4294901760
    %396 = vmatpush1.msra.mxu0 %v395
    %397 = vmatprep.subr.mxu0 0.0
    %v398 = vand.u32 %v43, 4294901760
    %v399 = vsub.f32 %v43, %v398
    %v400 = vand.u32 %v399, 4294901760
    %401 = vmatpush1.msra.mxu0 %v400
    %402 = vmatprep.subr.mxu0 0.0
    %403 = vmatpush1.msra.mxu0 0.0
    %404 = vmatprep.subr.mxu0 0.0
    %405 = vmatpush1.msra.mxu0 0.0
    %406 = vmatprep.subr.mxu0 0.0
    %407 = vmatpush1.msra.mxu0 0.0
    %408 = vmatprep.subr.mxu0 0.0
    %409 = vmatpush1.msra.mxu0 0.0
    %410 = vmatprep.subr.mxu0 0.0
    %411 = vmatpush1.msra.mxu0 0.0
    %412 = vmatprep.subr.mxu0 0.0
    %413 = vmatpush1.msra.mxu0 0.0
    %414 = vmatprep.subr.mxu0 0.0
    %415 = vmatpush1.msra.mxu0 0.0
    %416 = vmatprep.subr.mxu0 0.0
    %417 = vmatpush1.msra.mxu0 0.0
    %418 = vmatprep.subr.mxu0 0.0
    %419 = vmatpush1.msra.mxu0 0.0
    %420 = vmatprep.subr.mxu0 0.0
    %421 = vmatpush1.msra.mxu0 0.0
    %422 = vmatprep.subr.mxu0 0.0
    %423 = vmatpush1.msra.mxu0 0.0
    %424 = vmatprep.subr.mxu0 0.0
    %425 = vmatpush1.msra.mxu0 0.0
    %426 = vmatprep.subr.mxu0 0.0
    %427 = vmatpush1.msra.mxu0 0.0
    %428 = vmatprep.subr.mxu0 0.0
    %429 = vmatpush1.msra.mxu0 0.0
    %430 = vmatprep.subr.mxu0 0.0
    %431 = vmatpush1.msra.mxu0 0.0
    %432 = vmatprep.subr.mxu0 0.0
    %433 = vmatpush1.msra.mxu0 0.0
    %434 = vmatprep.subr.mxu0 0.0
    %435 = vmatpush1.msra.mxu0 0.0
    %436 = vmatprep.subr.mxu0 0.0
    %437 = vmatpush1.msra.mxu0 0.0
    %438 = vmatprep.subr.mxu0 0.0
    %439 = vmatpush1.msra.mxu0 0.0
    %440 = vmatprep.subr.mxu0 0.0
    %441 = vmatpush1.msra.mxu0 0.0
    %442 = vmatprep.subr.mxu0 0.0
    %443 = vmatpush1.msra.mxu0 0.0
    %444 = vmatprep.subr.mxu0 0.0
    %445 = vmatpush1.msra.mxu0 0.0
    %446 = vmatprep.subr.mxu0 0.0
    %447 = vmatpush1.msra.mxu0 0.0
    %448 = vmatprep.subr.mxu0 0.0
    %449 = vmatpush1.msra.mxu0 0.0
    %450 = vmatprep.subr.mxu0 0.0
    %451 = vmatpush1.msra.mxu0 0.0
    %452 = vmatprep.subr.mxu0 0.0
    %453 = vmatpush1.msra.mxu0 0.0
    %454 = vmatprep.subr.mxu0 0.0
    %455 = vmatpush1.msra.mxu0 0.0
    %456 = vmatprep.subr.mxu0 0.0
    %457 = vmatpush1.msra.mxu0 0.0
    %458 = vmatprep.mubr.f32.mxu0 0.0
    %v459 = vand.u32 %v53, 4294901760
    %460 = vmatmul.mubr.f32.gmra.mrb[0].mxu0 %v459
    %v461 = vpop.f32.mrb[0].mxu0
    %v462 = vadd.f32 %v379, %v461
    %v463 = vpop.f32.mrb[0].mxu0
    %464 = vdwg.mxu0
    %465 = vmatprep.subr.mxu0 0.0
    %v466 = vand.u32 %v40, 4294901760
    %467 = vmatpush1.msra.mxu0 %v466
    %468 = vmatprep.subr.mxu0 0.0
    %v469 = vand.u32 %v41, 4294901760
    %470 = vmatpush1.msra.mxu0 %v469
    %471 = vmatprep.subr.mxu0 0.0
    %v472 = vand.u32 %v42, 4294901760
    %473 = vmatpush1.msra.mxu0 %v472
    %474 = vmatprep.subr.mxu0 0.0
    %v475 = vand.u32 %v43, 4294901760
    %476 = vmatpush1.msra.mxu0 %v475
    %477 = vmatprep.subr.mxu0 0.0
    %478 = vmatpush1.msra.mxu0 0.0
    %479 = vmatprep.subr.mxu0 0.0
    %480 = vmatpush1.msra.mxu0 0.0
    %481 = vmatprep.subr.mxu0 0.0
    %482 = vmatpush1.msra.mxu0 0.0
    %483 = vmatprep.subr.mxu0 0.0
    %484 = vmatpush1.msra.mxu0 0.0
    %485 = vmatprep.subr.mxu0 0.0
    %486 = vmatpush1.msra.mxu0 0.0
    %487 = vmatprep.subr.mxu0 0.0
    %488 = vmatpush1.msra.mxu0 0.0
    %489 = vmatprep.subr.mxu0 0.0
    %490 = vmatpush1.msra.mxu0 0.0
    %491 = vmatprep.subr.mxu0 0.0
    %492 = vmatpush1.msra.mxu0 0.0
    %493 = vmatprep.subr.mxu0 0.0
    %494 = vmatpush1.msra.mxu0 0.0
    %495 = vmatprep.subr.mxu0 0.0
    %496 = vmatpush1.msra.mxu0 0.0
    %497 = vmatprep.subr.mxu0 0.0
    %498 = vmatpush1.msra.mxu0 0.0
    %499 = vmatprep.subr.mxu0 0.0
    %500 = vmatpush1.msra.mxu0 0.0
    %501 = vmatprep.subr.mxu0 0.0
    %502 = vmatpush1.msra.mxu0 0.0
    %503 = vmatprep.subr.mxu0 0.0
    %504 = vmatpush1.msra.mxu0 0.0
    %505 = vmatprep.subr.mxu0 0.0
    %506 = vmatpush1.msra.mxu0 0.0
    %507 = vmatprep.subr.mxu0 0.0
    %508 = vmatpush1.msra.mxu0 0.0
    %509 = vmatprep.subr.mxu0 0.0
    %510 = vmatpush1.msra.mxu0 0.0
    %511 = vmatprep.subr.mxu0 0.0
    %512 = vmatpush1.msra.mxu0 0.0
    %513 = vmatprep.subr.mxu0 0.0
    %514 = vmatpush1.msra.mxu0 0.0
    %515 = vmatprep.subr.mxu0 0.0
    %516 = vmatpush1.msra.mxu0 0.0
    %517 = vmatprep.subr.mxu0 0.0
    %518 = vmatpush1.msra.mxu0 0.0
    %519 = vmatprep.subr.mxu0 0.0
    %520 = vmatpush1.msra.mxu0 0.0
    %521 = vmatprep.subr.mxu0 0.0
    %522 = vmatpush1.msra.mxu0 0.0
    %523 = vmatprep.subr.mxu0 0.0
    %524 = vmatpush1.msra.mxu0 0.0
    %525 = vmatprep.subr.mxu0 0.0
    %526 = vmatpush1.msra.mxu0 0.0
    %527 = vmatprep.subr.mxu0 0.0
    %528 = vmatpush1.msra.mxu0 0.0
    %529 = vmatprep.subr.mxu0 0.0
    %530 = vmatpush1.msra.mxu0 0.0
    %531 = vmatprep.subr.mxu0 0.0
    %532 = vmatpush1.msra.mxu0 0.0
    %533 = vmatprep.mubr.f32.mxu0 0.0
    %v534 = vand.u32 %v53, 4294901760
    %535 = vmatmul.mubr.f32.gmra.mrb[0].mxu0 %v534
    %v536 = vpop.f32.mrb[0].mxu0
    %v537 = vadd.f32 %v462, %v536
    %v538 = vpop.f32.mrb[0].mxu0
    %539 = vdwg.mxu0
    %v540 = vmax.f32 %v537, 0.0
    %v541 = vld [vmem:[%s3] sm:$0xff]
    %v542 = vld [vmem:[%s3 + $0x8] sm:$0xff]
    %v543 = vld [vmem:[%s3 + $0x10] sm:$0xff]
    %v544 = vld [vmem:[%s3 + $0x18] sm:$0xff]
    %v545 = vld [vmem:[%s3 + $0x20] sm:$0xff]
    %v546 = vld [vmem:[%s3 + $0x28] sm:$0xff]
    %v547 = vld [vmem:[%s3 + $0x30] sm:$0xff]
    %v548 = vld [vmem:[%s3 + $0x38] sm:$0xff]
    %v549 = vld [vmem:[%s3 + $0x40] sm:$0xff]
    %v550 = vld [vmem:[%s3 + $0x48] sm:$0xff]
    %v551 = vld [vmem:[%s3 + $0x50] sm:$0xff]
    %v552 = vld [vmem:[%s3 + $0x58] sm:$0xff]
    %v553 = vld [vmem:[%s4] sm:$0x1]
    %v555 = vlaneseq
    %v556 = vshrl.u32 %v555, 7
    %v557 = vsub.s32 0, %v556
    %v558 = vrot.slane %v553, %v557
    %vm560 = vcmask 785408
    %v562 = vsel %vm560, %v540, 0
    %564 = vmatprep.subr.mxu0 0.0
    %v565 = vand.u32 %v541, 4294901760
    %566 = vmatpush1.msra.mxu0 %v565
    %567 = vmatprep.subr.mxu0 0.0
    %v568 = vand.u32 %v542, 4294901760
    %569 = vmatpush1.msra.mxu0 %v568
    %570 = vmatprep.subr.mxu0 0.0
    %v571 = vand.u32 %v543, 4294901760
    %572 = vmatpush1.msra.mxu0 %v571
    %573 = vmatprep.subr.mxu0 0.0
    %v574 = vand.u32 %v544, 4294901760
    %575 = vmatpush1.msra.mxu0 %v574
    %576 = vmatprep.subr.mxu0 0.0
    %v577 = vand.u32 %v545, 4294901760
    %578 = vmatpush1.msra.mxu0 %v577
    %579 = vmatprep.subr.mxu0 0.0
    %v580 = vand.u32 %v546, 4294901760
    %581 = vmatpush1.msra.mxu0 %v580
    %582 = vmatprep.subr.mxu0 0.0
    %v583 = vand.u32 %v547, 4294901760
    %584 = vmatpush1.msra.mxu0 %v583
    %585 = vmatprep.subr.mxu0 0.0
    %v586 = vand.u32 %v548, 4294901760
    %587 = vmatpush1.msra.mxu0 %v586
    %588 = vmatprep.subr.mxu0 0.0
    %v589 = vand.u32 %v549, 4294901760
    %590 = vmatpush1.msra.mxu0 %v589
    %591 = vmatprep.subr.mxu0 0.0
    %v592 = vand.u32 %v550, 4294901760
    %593 = vmatpush1.msra.mxu0 %v592
    %594 = vmatprep.subr.mxu0 0.0
    %v595 = vand.u32 %v551, 4294901760
    %596 = vmatpush1.msra.mxu0 %v595
    %597 = vmatprep.subr.mxu0 0.0
    %v598 = vand.u32 %v552, 4294901760
    %599 = vmatpush1.msra.mxu0 %v598
    %600 = vmatprep.subr.mxu0 0.0
    %601 = vmatpush1.msra.mxu0 0.0
    %602 = vmatprep.subr.mxu0 0.0
    %603 = vmatpush1.msra.mxu0 0.0
    %604 = vmatprep.subr.mxu0 0.0
    %605 = vmatpush1.msra.mxu0 0.0
    %606 = vmatprep.subr.mxu0 0.0
    %607 = vmatpush1.msra.mxu0 0.0
    %608 = vmatprep.subr.mxu0 0.0
    %609 = vmatpush1.msra.mxu0 0.0
    %610 = vmatprep.subr.mxu0 0.0
    %611 = vmatpush1.msra.mxu0 0.0
    %612 = vmatprep.subr.mxu0 0.0
    %613 = vmatpush1.msra.mxu0 0.0
    %614 = vmatprep.subr.mxu0 0.0
    %615 = vmatpush1.msra.mxu0 0.0
    %616 = vmatprep.subr.mxu0 0.0
    %617 = vmatpush1.msra.mxu0 0.0
    %618 = vmatprep.subr.mxu0 0.0
    %619 = vmatpush1.msra.mxu0 0.0
    %620 = vmatprep.subr.mxu0 0.0
    %621 = vmatpush1.msra.mxu0 0.0
    %622 = vmatprep.subr.mxu0 0.0
    %623 = vmatpush1.msra.mxu0 0.0
    %624 = vmatprep.subr.mxu0 0.0
    %625 = vmatpush1.msra.mxu0 0.0
    %626 = vmatprep.subr.mxu0 0.0
    %627 = vmatpush1.msra.mxu0 0.0
    %628 = vmatprep.subr.mxu0 0.0
    %629 = vmatpush1.msra.mxu0 0.0
    %630 = vmatprep.subr.mxu0 0.0
    %631 = vmatpush1.msra.mxu0 0.0
    %632 = vmatprep.subr.mxu0 0.0
    %633 = vmatpush1.msra.mxu0 0.0
    %634 = vmatprep.subr.mxu0 0.0
    %635 = vmatpush1.msra.mxu0 0.0
    %636 = vmatprep.subr.mxu0 0.0
    %637 = vmatpush1.msra.mxu0 0.0
    %638 = vmatprep.subr.mxu0 0.0
    %639 = vmatpush1.msra.mxu0 0.0
    %640 = vmatprep.mubr.f32.mxu0 0.0
    %v641 = vand.u32 %v562, 4294901760
    %v642 = vsub.f32 %v562, %v641
    %v643 = vand.u32 %v642, 4294901760
    %v644 = vsub.f32 %v642, %v643
    %v645 = vand.u32 %v644, 4294901760
    %646 = vmatmul.mubr.f32.gmra.mrb[0].mxu0 %v645
    %v647 = vpop.f32.mrb[0].mxu0
    %v648 = vadd.f32 %v558, %v647
    %v649 = vpop.f32.mrb[0].mxu0
    %650 = vdwg.mxu0
    %651 = vmatprep.subr.mxu0 0.0
    %v652 = vand.u32 %v541, 4294901760
    %v653 = vsub.f32 %v541, %v652
    %v654 = vand.u32 %v653, 4294901760
    %v655 = vsub.f32 %v653, %v654
    %v656 = vand.u32 %v655, 4294901760
    %657 = vmatpush1.msra.mxu0 %v656
    %658 = vmatprep.subr.mxu0 0.0
    %v659 = vand.u32 %v542, 4294901760
    %v660 = vsub.f32 %v542, %v659
    %v661 = vand.u32 %v660, 4294901760
    %v662 = vsub.f32 %v660, %v661
    %v663 = vand.u32 %v662, 4294901760
    %664 = vmatpush1.msra.mxu0 %v663
    %665 = vmatprep.subr.mxu0 0.0
    %v666 = vand.u32 %v543, 4294901760
    %v667 = vsub.f32 %v543, %v666
    %v668 = vand.u32 %v667, 4294901760
    %v669 = vsub.f32 %v667, %v668
    %v670 = vand.u32 %v669, 4294901760
    %671 = vmatpush1.msra.mxu0 %v670
    %672 = vmatprep.subr.mxu0 0.0
    %v673 = vand.u32 %v544, 4294901760
    %v674 = vsub.f32 %v544, %v673
    %v675 = vand.u32 %v674, 4294901760
    %v676 = vsub.f32 %v674, %v675
    %v677 = vand.u32 %v676, 4294901760
    %678 = vmatpush1.msra.mxu0 %v677
    %679 = vmatprep.subr.mxu0 0.0
    %v680 = vand.u32 %v545, 4294901760
    %v681 = vsub.f32 %v545, %v680
    %v682 = vand.u32 %v681, 4294901760
    %v683 = vsub.f32 %v681, %v682
    %v684 = vand.u32 %v683, 4294901760
    %685 = vmatpush1.msra.mxu0 %v684
    %686 = vmatprep.subr.mxu0 0.0
    %v687 = vand.u32 %v546, 4294901760
    %v688 = vsub.f32 %v546, %v687
    %v689 = vand.u32 %v688, 4294901760
    %v690 = vsub.f32 %v688, %v689
    %v691 = vand.u32 %v690, 4294901760
    %692 = vmatpush1.msra.mxu0 %v691
    %693 = vmatprep.subr.mxu0 0.0
    %v694 = vand.u32 %v547, 4294901760
    %v695 = vsub.f32 %v547, %v694
    %v696 = vand.u32 %v695, 4294901760
    %v697 = vsub.f32 %v695, %v696
    %v698 = vand.u32 %v697, 4294901760
    %699 = vmatpush1.msra.mxu0 %v698
    %700 = vmatprep.subr.mxu0 0.0
    %v701 = vand.u32 %v548, 4294901760
    %v702 = vsub.f32 %v548, %v701
    %v703 = vand.u32 %v702, 4294901760
    %v704 = vsub.f32 %v702, %v703
    %v705 = vand.u32 %v704, 4294901760
    %706 = vmatpush1.msra.mxu0 %v705
    %707 = vmatprep.subr.mxu0 0.0
    %v708 = vand.u32 %v549, 4294901760
    %v709 = vsub.f32 %v549, %v708
    %v710 = vand.u32 %v709, 4294901760
    %v711 = vsub.f32 %v709, %v710
    %v712 = vand.u32 %v711, 4294901760
    %713 = vmatpush1.msra.mxu0 %v712
    %714 = vmatprep.subr.mxu0 0.0
    %v715 = vand.u32 %v550, 4294901760
    %v716 = vsub.f32 %v550, %v715
    %v717 = vand.u32 %v716, 4294901760
    %v718 = vsub.f32 %v716, %v717
    %v719 = vand.u32 %v718, 4294901760
    %720 = vmatpush1.msra.mxu0 %v719
    %721 = vmatprep.subr.mxu0 0.0
    %v722 = vand.u32 %v551, 4294901760
    %v723 = vsub.f32 %v551, %v722
    %v724 = vand.u32 %v723, 4294901760
    %v725 = vsub.f32 %v723, %v724
    %v726 = vand.u32 %v725, 4294901760
    %727 = vmatpush1.msra.mxu0 %v726
    %728 = vmatprep.subr.mxu0 0.0
    %v729 = vand.u32 %v552, 4294901760
    %v730 = vsub.f32 %v552, %v729
    %v731 = vand.u32 %v730, 4294901760
    %v732 = vsub.f32 %v730, %v731
    %v733 = vand.u32 %v732, 4294901760
    %734 = vmatpush1.msra.mxu0 %v733
    %735 = vmatprep.subr.mxu0 0.0
    %736 = vmatpush1.msra.mxu0 0.0
    %737 = vmatprep.subr.mxu0 0.0
    %738 = vmatpush1.msra.mxu0 0.0
    %739 = vmatprep.subr.mxu0 0.0
    %740 = vmatpush1.msra.mxu0 0.0
    %741 = vmatprep.subr.mxu0 0.0
    %742 = vmatpush1.msra.mxu0 0.0
    %743 = vmatprep.subr.mxu0 0.0
    %744 = vmatpush1.msra.mxu0 0.0
    %745 = vmatprep.subr.mxu0 0.0
    %746 = vmatpush1.msra.mxu0 0.0
    %747 = vmatprep.subr.mxu0 0.0
    %748 = vmatpush1.msra.mxu0 0.0
    %749 = vmatprep.subr.mxu0 0.0
    %750 = vmatpush1.msra.mxu0 0.0
    %751 = vmatprep.subr.mxu0 0.0
    %752 = vmatpush1.msra.mxu0 0.0
    %753 = vmatprep.subr.mxu0 0.0
    %754 = vmatpush1.msra.mxu0 0.0
    %755 = vmatprep.subr.mxu0 0.0
    %756 = vmatpush1.msra.mxu0 0.0
    %757 = vmatprep.subr.mxu0 0.0
    %758 = vmatpush1.msra.mxu0 0.0
    %759 = vmatprep.subr.mxu0 0.0
    %760 = vmatpush1.msra.mxu0 0.0
    %761 = vmatprep.subr.mxu0 0.0
    %762 = vmatpush1.msra.mxu0 0.0
    %763 = vmatprep.subr.mxu0 0.0
    %764 = vmatpush1.msra.mxu0 0.0
    %765 = vmatprep.subr.mxu0 0.0
    %766 = vmatpush1.msra.mxu0 0.0
    %767 = vmatprep.subr.mxu0 0.0
    %768 = vmatpush1.msra.mxu0 0.0
    %769 = vmatprep.subr.mxu0 0.0
    %770 = vmatpush1.msra.mxu0 0.0
    %771 = vmatprep.subr.mxu0 0.0
    %772 = vmatpush1.msra.mxu0 0.0
    %773 = vmatprep.subr.mxu0 0.0
    %774 = vmatpush1.msra.mxu0 0.0
    %775 = vmatprep.mubr.f32.mxu0 0.0
    %v776 = vand.u32 %v562, 4294901760
    %777 = vmatmul.mubr.f32.gmra.mrb[0].mxu0 %v776
    %v778 = vpop.f32.mrb[0].mxu0
    %v779 = vadd.f32 %v648, %v778
    %v780 = vpop.f32.mrb[0].mxu0
    %781 = vdwg.mxu0
    %782 = vmatprep.subr.mxu0 0.0
    %v783 = vand.u32 %v541, 4294901760
    %v784 = vsub.f32 %v541, %v783
    %785 = vmatpush1.msra.mxu0 %v784
    %786 = vmatprep.subr.mxu0 0.0
    %v787 = vand.u32 %v542, 4294901760
    %v788 = vsub.f32 %v542, %v787
    %789 = vmatpush1.msra.mxu0 %v788
    %790 = vmatprep.subr.mxu0 0.0
    %v791 = vand.u32 %v543, 4294901760
    %v792 = vsub.f32 %v543, %v791
    %793 = vmatpush1.msra.mxu0 %v792
    %794 = vmatprep.subr.mxu0 0.0
    %v795 = vand.u32 %v544, 4294901760
    %v796 = vsub.f32 %v544, %v795
    %797 = vmatpush1.msra.mxu0 %v796
    %798 = vmatprep.subr.mxu0 0.0
    %v799 = vand.u32 %v545, 4294901760
    %v800 = vsub.f32 %v545, %v799
    %801 = vmatpush1.msra.mxu0 %v800
    %802 = vmatprep.subr.mxu0 0.0
    %v803 = vand.u32 %v546, 4294901760
    %v804 = vsub.f32 %v546, %v803
    %805 = vmatpush1.msra.mxu0 %v804
    %806 = vmatprep.subr.mxu0 0.0
    %v807 = vand.u32 %v547, 4294901760
    %v808 = vsub.f32 %v547, %v807
    %809 = vmatpush1.msra.mxu0 %v808
    %810 = vmatprep.subr.mxu0 0.0
    %v811 = vand.u32 %v548, 4294901760
    %v812 = vsub.f32 %v548, %v811
    %813 = vmatpush1.msra.mxu0 %v812
    %814 = vmatprep.subr.mxu0 0.0
    %v815 = vand.u32 %v549, 4294901760
    %v816 = vsub.f32 %v549, %v815
    %817 = vmatpush1.msra.mxu0 %v816
    %818 = vmatprep.subr.mxu0 0.0
    %v819 = vand.u32 %v550, 4294901760
    %v820 = vsub.f32 %v550, %v819
    %821 = vmatpush1.msra.mxu0 %v820
    %822 = vmatprep.subr.mxu0 0.0
    %v823 = vand.u32 %v551, 4294901760
    %v824 = vsub.f32 %v551, %v823
    %825 = vmatpush1.msra.mxu0 %v824
    %826 = vmatprep.subr.mxu0 0.0
    %v827 = vand.u32 %v552, 4294901760
    %v828 = vsub.f32 %v552, %v827
    %829 = vmatpush1.msra.mxu0 %v828
    %830 = vmatprep.subr.mxu0 0.0
    %831 = vmatpush1.msra.mxu0 0.0
    %832 = vmatprep.subr.mxu0 0.0
    %833 = vmatpush1.msra.mxu0 0.0
    %834 = vmatprep.subr.mxu0 0.0
    %835 = vmatpush1.msra.mxu0 0.0
    %836 = vmatprep.subr.mxu0 0.0
    %837 = vmatpush1.msra.mxu0 0.0
    %838 = vmatprep.subr.mxu0 0.0
    %839 = vmatpush1.msra.mxu0 0.0
    %840 = vmatprep.subr.mxu0 0.0
    %841 = vmatpush1.msra.mxu0 0.0
    %842 = vmatprep.subr.mxu0 0.0
    %843 = vmatpush1.msra.mxu0 0.0
    %844 = vmatprep.subr.mxu0 0.0
    %845 = vmatpush1.msra.mxu0 0.0
    %846 = vmatprep.subr.mxu0 0.0
    %847 = vmatpush1.msra.mxu0 0.0
    %848 = vmatprep.subr.mxu0 0.0
    %849 = vmatpush1.msra.mxu0 0.0
    %850 = vmatprep.subr.mxu0 0.0
    %851 = vmatpush1.msra.mxu0 0.0
    %852 = vmatprep.subr.mxu0 0.0
    %853 = vmatpush1.msra.mxu0 0.0
    %854 = vmatprep.subr.mxu0 0.0
    %855 = vmatpush1.msra.mxu0 0.0
    %856 = vmatprep.subr.mxu0 0.0
    %857 = vmatpush1.msra.mxu0 0.0
    %858 = vmatprep.subr.mxu0 0.0
    %859 = vmatpush1.msra.mxu0 0.0
    %860 = vmatprep.subr.mxu0 0.0
    %861 = vmatpush1.msra.mxu0 0.0
    %862 = vmatprep.subr.mxu0 0.0
    %863 = vmatpush1.msra.mxu0 0.0
    %864 = vmatprep.subr.mxu0 0.0
    %865 = vmatpush1.msra.mxu0 0.0
    %866 = vmatprep.subr.mxu0 0.0
    %867 = vmatpush1.msra.mxu0 0.0
    %868 = vmatprep.subr.mxu0 0.0
    %869 = vmatpush1.msra.mxu0 0.0
    %870 = vmatprep.mubr.f32.mxu0 0.0
    %v871 = vand.u32 %v562, 4294901760
    %v872 = vsub.f32 %v562, %v871
    %873 = vmatmul.mubr.f32.gmra.mrb[0].mxu0 %v872
    %v874 = vpop.f32.mrb[0].mxu0
    %v875 = vadd.f32 %v779, %v874
    %v876 = vpop.f32.mrb[0].mxu0
    %877 = vdwg.mxu0
    %878 = vmatprep.subr.mxu0 0.0
    %v879 = vand.u32 %v541, 4294901760
    %880 = vmatpush1.msra.mxu0 %v879
    %881 = vmatprep.subr.mxu0 0.0
    %v882 = vand.u32 %v542, 4294901760
    %883 = vmatpush1.msra.mxu0 %v882
    %884 = vmatprep.subr.mxu0 0.0
    %v885 = vand.u32 %v543, 4294901760
    %886 = vmatpush1.msra.mxu0 %v885
    %887 = vmatprep.subr.mxu0 0.0
    %v888 = vand.u32 %v544, 4294901760
    %889 = vmatpush1.msra.mxu0 %v888
    %890 = vmatprep.subr.mxu0 0.0
    %v891 = vand.u32 %v545, 4294901760
    %892 = vmatpush1.msra.mxu0 %v891
    %893 = vmatprep.subr.mxu0 0.0
    %v894 = vand.u32 %v546, 4294901760
    %895 = vmatpush1.msra.mxu0 %v894
    %896 = vmatprep.subr.mxu0 0.0
    %v897 = vand.u32 %v547, 4294901760
    %898 = vmatpush1.msra.mxu0 %v897
    %899 = vmatprep.subr.mxu0 0.0
    %v900 = vand.u32 %v548, 4294901760
    %901 = vmatpush1.msra.mxu0 %v900
    %902 = vmatprep.subr.mxu0 0.0
    %v903 = vand.u32 %v549, 4294901760
    %904 = vmatpush1.msra.mxu0 %v903
    %905 = vmatprep.subr.mxu0 0.0
    %v906 = vand.u32 %v550, 4294901760
    %907 = vmatpush1.msra.mxu0 %v906
    %908 = vmatprep.subr.mxu0 0.0
    %v909 = vand.u32 %v551, 4294901760
    %910 = vmatpush1.msra.mxu0 %v909
    %911 = vmatprep.subr.mxu0 0.0
    %v912 = vand.u32 %v552, 4294901760
    %913 = vmatpush1.msra.mxu0 %v912
    %914 = vmatprep.subr.mxu0 0.0
    %915 = vmatpush1.msra.mxu0 0.0
    %916 = vmatprep.subr.mxu0 0.0
    %917 = vmatpush1.msra.mxu0 0.0
    %918 = vmatprep.subr.mxu0 0.0
    %919 = vmatpush1.msra.mxu0 0.0
    %920 = vmatprep.subr.mxu0 0.0
    %921 = vmatpush1.msra.mxu0 0.0
    %922 = vmatprep.subr.mxu0 0.0
    %923 = vmatpush1.msra.mxu0 0.0
    %924 = vmatprep.subr.mxu0 0.0
    %925 = vmatpush1.msra.mxu0 0.0
    %926 = vmatprep.subr.mxu0 0.0
    %927 = vmatpush1.msra.mxu0 0.0
    %928 = vmatprep.subr.mxu0 0.0
    %929 = vmatpush1.msra.mxu0 0.0
    %930 = vmatprep.subr.mxu0 0.0
    %931 = vmatpush1.msra.mxu0 0.0
    %932 = vmatprep.subr.mxu0 0.0
    %933 = vmatpush1.msra.mxu0 0.0
    %934 = vmatprep.subr.mxu0 0.0
    %935 = vmatpush1.msra.mxu0 0.0
    %936 = vmatprep.subr.mxu0 0.0
    %937 = vmatpush1.msra.mxu0 0.0
    %938 = vmatprep.subr.mxu0 0.0
    %939 = vmatpush1.msra.mxu0 0.0
    %940 = vmatprep.subr.mxu0 0.0
    %941 = vmatpush1.msra.mxu0 0.0
    %942 = vmatprep.subr.mxu0 0.0
    %943 = vmatpush1.msra.mxu0 0.0
    %944 = vmatprep.subr.mxu0 0.0
    %945 = vmatpush1.msra.mxu0 0.0
    %946 = vmatprep.subr.mxu0 0.0
    %947 = vmatpush1.msra.mxu0 0.0
    %948 = vmatprep.subr.mxu0 0.0
    %949 = vmatpush1.msra.mxu0 0.0
    %950 = vmatprep.subr.mxu0 0.0
    %951 = vmatpush1.msra.mxu0 0.0
    %952 = vmatprep.subr.mxu0 0.0
    %953 = vmatpush1.msra.mxu0 0.0
    %954 = vmatprep.mubr.f32.mxu0 0.0
    %v955 = vand.u32 %v562, 4294901760
    %v956 = vsub.f32 %v562, %v955
    %v957 = vand.u32 %v956, 4294901760
    %958 = vmatmul.mubr.f32.gmra.mrb[0].mxu0 %v957
    %v959 = vpop.f32.mrb[0].mxu0
    %v960 = vadd.f32 %v875, %v959
    %v961 = vpop.f32.mrb[0].mxu0
    %962 = vdwg.mxu0
    %963 = vmatprep.subr.mxu0 0.0
    %v964 = vand.u32 %v541, 4294901760
    %v965 = vsub.f32 %v541, %v964
    %v966 = vand.u32 %v965, 4294901760
    %967 = vmatpush1.msra.mxu0 %v966
    %968 = vmatprep.subr.mxu0 0.0
    %v969 = vand.u32 %v542, 4294901760
    %v970 = vsub.f32 %v542, %v969
    %v971 = vand.u32 %v970, 4294901760
    %972 = vmatpush1.msra.mxu0 %v971
    %973 = vmatprep.subr.mxu0 0.0
    %v974 = vand.u32 %v543, 4294901760
    %v975 = vsub.f32 %v543, %v974
    %v976 = vand.u32 %v975, 4294901760
    %977 = vmatpush1.msra.mxu0 %v976
    %978 = vmatprep.subr.mxu0 0.0
    %v979 = vand.u32 %v544, 4294901760
    %v980 = vsub.f32 %v544, %v979
    %v981 = vand.u32 %v980, 4294901760
    %982 = vmatpush1.msra.mxu0 %v981
    %983 = vmatprep.subr.mxu0 0.0
    %v984 = vand.u32 %v545, 4294901760
    %v985 = vsub.f32 %v545, %v984
    %v986 = vand.u32 %v985, 4294901760
    %987 = vmatpush1.msra.mxu0 %v986
    %988 = vmatprep.subr.mxu0 0.0
    %v989 = vand.u32 %v546, 4294901760
    %v990 = vsub.f32 %v546, %v989
    %v991 = vand.u32 %v990, 4294901760
    %992 = vmatpush1.msra.mxu0 %v991
    %993 = vmatprep.subr.mxu0 0.0
    %v994 = vand.u32 %v547, 4294901760
    %v995 = vsub.f32 %v547, %v994
    %v996 = vand.u32 %v995, 4294901760
    %997 = vmatpush1.msra.mxu0 %v996
    %998 = vmatprep.subr.mxu0 0.0
    %v999 = vand.u32 %v548, 4294901760
    %v1000 = vsub.f32 %v548, %v999
    %v1001 = vand.u32 %v1000, 4294901760
    %1002 = vmatpush1.msra.mxu0 %v1001
    %1003 = vmatprep.subr.mxu0 0.0
    %v1004 = vand.u32 %v549, 4294901760
    %v1005 = vsub.f32 %v549, %v1004
    %v1006 = vand.u32 %v1005, 4294901760
    %1007 = vmatpush1.msra.mxu0 %v1006
    %1008 = vmatprep.subr.mxu0 0.0
    %v1009 = vand.u32 %v550, 4294901760
    %v1010 = vsub.f32 %v550, %v1009
    %v1011 = vand.u32 %v1010, 4294901760
    %1012 = vmatpush1.msra.mxu0 %v1011
    %1013 = vmatprep.subr.mxu0 0.0
    %v1014 = vand.u32 %v551, 4294901760
    %v1015 = vsub.f32 %v551, %v1014
    %v1016 = vand.u32 %v1015, 4294901760
    %1017 = vmatpush1.msra.mxu0 %v1016
    %1018 = vmatprep.subr.mxu0 0.0
    %v1019 = vand.u32 %v552, 4294901760
    %v1020 = vsub.f32 %v552, %v1019
    %v1021 = vand.u32 %v1020, 4294901760
    %1022 = vmatpush1.msra.mxu0 %v1021
    %1023 = vmatprep.subr.mxu0 0.0
    %1024 = vmatpush1.msra.mxu0 0.0
    %1025 = vmatprep.subr.mxu0 0.0
    %1026 = vmatpush1.msra.mxu0 0.0
    %1027 = vmatprep.subr.mxu0 0.0
    %1028 = vmatpush1.msra.mxu0 0.0
    %1029 = vmatprep.subr.mxu0 0.0
    %1030 = vmatpush1.msra.mxu0 0.0
    %1031 = vmatprep.subr.mxu0 0.0
    %1032 = vmatpush1.msra.mxu0 0.0
    %1033 = vmatprep.subr.mxu0 0.0
    %1034 = vmatpush1.msra.mxu0 0.0
    %1035 = vmatprep.subr.mxu0 0.0
    %1036 = vmatpush1.msra.mxu0 0.0
    %1037 = vmatprep.subr.mxu0 0.0
    %1038 = vmatpush1.msra.mxu0 0.0
    %1039 = vmatprep.subr.mxu0 0.0
    %1040 = vmatpush1.msra.mxu0 0.0
    %1041 = vmatprep.subr.mxu0 0.0
    %1042 = vmatpush1.msra.mxu0 0.0
    %1043 = vmatprep.subr.mxu0 0.0
    %1044 = vmatpush1.msra.mxu0 0.0
    %1045 = vmatprep.subr.mxu0 0.0
    %1046 = vmatpush1.msra.mxu0 0.0
    %1047 = vmatprep.subr.mxu0 0.0
    %1048 = vmatpush1.msra.mxu0 0.0
    %1049 = vmatprep.subr.mxu0 0.0
    %1050 = vmatpush1.msra.mxu0 0.0
    %1051 = vmatprep.subr.mxu0 0.0
    %1052 = vmatpush1.msra.mxu0 0.0
    %1053 = vmatprep.subr.mxu0 0.0
    %1054 = vmatpush1.msra.mxu0 0.0
    %1055 = vmatprep.subr.mxu0 0.0
    %1056 = vmatpush1.msra.mxu0 0.0
    %1057 = vmatprep.subr.mxu0 0.0
    %1058 = vmatpush1.msra.mxu0 0.0
    %1059 = vmatprep.subr.mxu0 0.0
    %1060 = vmatpush1.msra.mxu0 0.0
    %1061 = vmatprep.subr.mxu0 0.0
    %1062 = vmatpush1.msra.mxu0 0.0
    %1063 = vmatprep.mubr.f32.mxu0 0.0
    %v1064 = vand.u32 %v562, 4294901760
    %1065 = vmatmul.mubr.f32.gmra.mrb[0].mxu0 %v1064
    %v1066 = vpop.f32.mrb[0].mxu0
    %v1067 = vadd.f32 %v960, %v1066
    %v1068 = vpop.f32.mrb[0].mxu0
    %1069 = vdwg.mxu0
    %1070 = vmatprep.subr.mxu0 0.0
    %v1071 = vand.u32 %v541, 4294901760
    %1072 = vmatpush1.msra.mxu0 %v1071
    %1073 = vmatprep.subr.mxu0 0.0
    %v1074 = vand.u32 %v542, 4294901760
    %1075 = vmatpush1.msra.mxu0 %v1074
    %1076 = vmatprep.subr.mxu0 0.0
    %v1077 = vand.u32 %v543, 4294901760
    %1078 = vmatpush1.msra.mxu0 %v1077
    %1079 = vmatprep.subr.mxu0 0.0
    %v1080 = vand.u32 %v544, 4294901760
    %1081 = vmatpush1.msra.mxu0 %v1080
    %1082 = vmatprep.subr.mxu0 0.0
    %v1083 = vand.u32 %v545, 4294901760
    %1084 = vmatpush1.msra.mxu0 %v1083
    %1085 = vmatprep.subr.mxu0 0.0
    %v1086 = vand.u32 %v546, 4294901760
    %1087 = vmatpush1.msra.mxu0 %v1086
    %1088 = vmatprep.subr.mxu0 0.0
    %v1089 = vand.u32 %v547, 4294901760
    %1090 = vmatpush1.msra.mxu0 %v1089
    %1091 = vmatprep.subr.mxu0 0.0
    %v1092 = vand.u32 %v548, 4294901760
    %1093 = vmatpush1.msra.mxu0 %v1092
    %1094 = vmatprep.subr.mxu0 0.0
    %v1095 = vand.u32 %v549, 4294901760
    %1096 = vmatpush1.msra.mxu0 %v1095
    %1097 = vmatprep.subr.mxu0 0.0
    %v1098 = vand.u32 %v550, 4294901760
    %1099 = vmatpush1.msra.mxu0 %v1098
    %1100 = vmatprep.subr.mxu0 0.0
    %v1101 = vand.u32 %v551, 4294901760
    %1102 = vmatpush1.msra.mxu0 %v1101
    %1103 = vmatprep.subr.mxu0 0.0
    %v1104 = vand.u32 %v552, 4294901760
    %1105 = vmatpush1.msra.mxu0 %v1104
    %1106 = vmatprep.subr.mxu0 0.0
    %1107 = vmatpush1.msra.mxu0 0.0
    %1108 = vmatprep.subr.mxu0 0.0
    %1109 = vmatpush1.msra.mxu0 0.0
    %1110 = vmatprep.subr.mxu0 0.0
    %1111 = vmatpush1.msra.mxu0 0.0
    %1112 = vmatprep.subr.mxu0 0.0
    %1113 = vmatpush1.msra.mxu0 0.0
    %1114 = vmatprep.subr.mxu0 0.0
    %1115 = vmatpush1.msra.mxu0 0.0
    %1116 = vmatprep.subr.mxu0 0.0
    %1117 = vmatpush1.msra.mxu0 0.0
    %1118 = vmatprep.subr.mxu0 0.0
    %1119 = vmatpush1.msra.mxu0 0.0
    %1120 = vmatprep.subr.mxu0 0.0
    %1121 = vmatpush1.msra.mxu0 0.0
    %1122 = vmatprep.subr.mxu0 0.0
    %1123 = vmatpush1.msra.mxu0 0.0
    %1124 = vmatprep.subr.mxu0 0.0
    %1125 = vmatpush1.msra.mxu0 0.0
    %1126 = vmatprep.subr.mxu0 0.0
    %1127 = vmatpush1.msra.mxu0 0.0
    %1128 = vmatprep.subr.mxu0 0.0
    %1129 = vmatpush1.msra.mxu0 0.0
    %1130 = vmatprep.subr.mxu0 0.0
    %1131 = vmatpush1.msra.mxu0 0.0
    %1132 = vmatprep.subr.mxu0 0.0
    %1133 = vmatpush1.msra.mxu0 0.0
    %1134 = vmatprep.subr.mxu0 0.0
    %1135 = vmatpush1.msra.mxu0 0.0
    %1136 = vmatprep.subr.mxu0 0.0
    %1137 = vmatpush1.msra.mxu0 0.0
    %1138 = vmatprep.subr.mxu0 0.0
    %1139 = vmatpush1.msra.mxu0 0.0
    %1140 = vmatprep.subr.mxu0 0.0
    %1141 = vmatpush1.msra.mxu0 0.0
    %1142 = vmatprep.subr.mxu0 0.0
    %1143 = vmatpush1.msra.mxu0 0.0
    %1144 = vmatprep.subr.mxu0 0.0
    %1145 = vmatpush1.msra.mxu0 0.0
    %1146 = vmatprep.mubr.f32.mxu0 0.0
    %v1147 = vand.u32 %v562, 4294901760
    %1148 = vmatmul.mubr.f32.gmra.mrb[0].mxu0 %v1147
    %v1149 = vpop.f32.mrb[0].mxu0
    %v1150 = vadd.f32 %v1067, %v1149
    %v1151 = vpop.f32.mrb[0].mxu0
    %1152 = vdwg.mxu0
    %v1153 = vmax.f32 %v1150, 0.0
    %v1154 = vld [vmem:[%s5] sm:$0xff]
    %v1155 = vld [vmem:[%s5 + $0x8] sm:$0xff]
    %v1156 = vld [vmem:[%s5 + $0x10] sm:$0xff]
    %v1157 = vld [vmem:[%s5 + $0x18] sm:$0xff]
    %v1158 = vld [vmem:[%s6] sm:$0x1]
    %v1160 = vlaneseq
    %v1161 = vshrl.u32 %v1160, 7
    %v1162 = vsub.s32 0, %v1161
    %v1163 = vrot.slane %v1158, %v1162
    %1165 = vmatprep.subr.mxu0 0.0
    %v1166 = vand.u32 %v1154, 4294901760
    %1167 = vmatpush1.msra.mxu0 %v1166
    %1168 = vmatprep.subr.mxu0 0.0
    %v1169 = vand.u32 %v1155, 4294901760
    %1170 = vmatpush1.msra.mxu0 %v1169
    %1171 = vmatprep.subr.mxu0 0.0
    %v1172 = vand.u32 %v1156, 4294901760
    %1173 = vmatpush1.msra.mxu0 %v1172
    %1174 = vmatprep.subr.mxu0 0.0
    %v1175 = vand.u32 %v1157, 4294901760
    %1176 = vmatpush1.msra.mxu0 %v1175
    %1177 = vmatprep.subr.mxu0 0.0
    %1178 = vmatpush1.msra.mxu0 0.0
    %1179 = vmatprep.subr.mxu0 0.0
    %1180 = vmatpush1.msra.mxu0 0.0
    %1181 = vmatprep.subr.mxu0 0.0
    %1182 = vmatpush1.msra.mxu0 0.0
    %1183 = vmatprep.subr.mxu0 0.0
    %1184 = vmatpush1.msra.mxu0 0.0
    %1185 = vmatprep.subr.mxu0 0.0
    %1186 = vmatpush1.msra.mxu0 0.0
    %1187 = vmatprep.subr.mxu0 0.0
    %1188 = vmatpush1.msra.mxu0 0.0
    %1189 = vmatprep.subr.mxu0 0.0
    %1190 = vmatpush1.msra.mxu0 0.0
    %1191 = vmatprep.subr.mxu0 0.0
    %1192 = vmatpush1.msra.mxu0 0.0
    %1193 = vmatprep.subr.mxu0 0.0
    %1194 = vmatpush1.msra.mxu0 0.0
    %1195 = vmatprep.subr.mxu0 0.0
    %1196 = vmatpush1.msra.mxu0 0.0
    %1197 = vmatprep.subr.mxu0 0.0
    %1198 = vmatpush1.msra.mxu0 0.0
    %1199 = vmatprep.subr.mxu0 0.0
    %1200 = vmatpush1.msra.mxu0 0.0
    %1201 = vmatprep.subr.mxu0 0.0
    %1202 = vmatpush1.msra.mxu0 0.0
    %1203 = vmatprep.subr.mxu0 0.0
    %1204 = vmatpush1.msra.mxu0 0.0
    %1205 = vmatprep.subr.mxu0 0.0
    %1206 = vmatpush1.msra.mxu0 0.0
    %1207 = vmatprep.subr.mxu0 0.0
    %1208 = vmatpush1.msra.mxu0 0.0
    %1209 = vmatprep.subr.mxu0 0.0
    %1210 = vmatpush1.msra.mxu0 0.0
    %1211 = vmatprep.subr.mxu0 0.0
    %1212 = vmatpush1.msra.mxu0 0.0
    %1213 = vmatprep.subr.mxu0 0.0
    %1214 = vmatpush1.msra.mxu0 0.0
    %1215 = vmatprep.subr.mxu0 0.0
    %1216 = vmatpush1.msra.mxu0 0.0
    %1217 = vmatprep.subr.mxu0 0.0
    %1218 = vmatpush1.msra.mxu0 0.0
    %1219 = vmatprep.subr.mxu0 0.0
    %1220 = vmatpush1.msra.mxu0 0.0
    %1221 = vmatprep.subr.mxu0 0.0
    %1222 = vmatpush1.msra.mxu0 0.0
    %1223 = vmatprep.subr.mxu0 0.0
    %1224 = vmatpush1.msra.mxu0 0.0
    %1225 = vmatprep.subr.mxu0 0.0
    %1226 = vmatpush1.msra.mxu0 0.0
    %1227 = vmatprep.subr.mxu0 0.0
    %1228 = vmatpush1.msra.mxu0 0.0
    %1229 = vmatprep.subr.mxu0 0.0
    %1230 = vmatpush1.msra.mxu0 0.0
    %1231 = vmatprep.subr.mxu0 0.0
    %1232 = vmatpush1.msra.mxu0 0.0
    %1233 = vmatprep.mubr.f32.mxu0 0.0
    %v1234 = vand.u32 %v53, 4294901760
    %v1235 = vsub.f32 %v53, %v1234
    %v1236 = vand.u32 %v1235, 4294901760
    %v1237 = vsub.f32 %v1235, %v1236
    %v1238 = vand.u32 %v1237, 4294901760
    %1239 = vmatmul.mubr.f32.gmra.mrb[0].mxu0 %v1238
    %v1240 = vpop.f32.mrb[0].mxu0
    %v1241 = vadd.f32 %v1163, %v1240
    %v1242 = vpop.f32.mrb[0].mxu0
    %1243 = vdwg.mxu0
    %1244 = vmatprep.subr.mxu0 0.0
    %v1245 = vand.u32 %v1154, 4294901760
    %v1246 = vsub.f32 %v1154, %v1245
    %v1247 = vand.u32 %v1246, 4294901760
    %v1248 = vsub.f32 %v1246, %v1247
    %v1249 = vand.u32 %v1248, 4294901760
    %1250 = vmatpush1.msra.mxu0 %v1249
    %1251 = vmatprep.subr.mxu0 0.0
    %v1252 = vand.u32 %v1155, 4294901760
    %v1253 = vsub.f32 %v1155, %v1252
    %v1254 = vand.u32 %v1253, 4294901760
    %v1255 = vsub.f32 %v1253, %v1254
    %v1256 = vand.u32 %v1255, 4294901760
    %1257 = vmatpush1.msra.mxu0 %v1256
    %1258 = vmatprep.subr.mxu0 0.0
    %v1259 = vand.u32 %v1156, 4294901760
    %v1260 = vsub.f32 %v1156, %v1259
    %v1261 = vand.u32 %v1260, 4294901760
    %v1262 = vsub.f32 %v1260, %v1261
    %v1263 = vand.u32 %v1262, 4294901760
    %1264 = vmatpush1.msra.mxu0 %v1263
    %1265 = vmatprep.subr.mxu0 0.0
    %v1266 = vand.u32 %v1157, 4294901760
    %v1267 = vsub.f32 %v1157, %v1266
    %v1268 = vand.u32 %v1267, 4294901760
    %v1269 = vsub.f32 %v1267, %v1268
    %v1270 = vand.u32 %v1269, 4294901760
    %1271 = vmatpush1.msra.mxu0 %v1270
    %1272 = vmatprep.subr.mxu0 0.0
    %1273 = vmatpush1.msra.mxu0 0.0
    %1274 = vmatprep.subr.mxu0 0.0
    %1275 = vmatpush1.msra.mxu0 0.0
    %1276 = vmatprep.subr.mxu0 0.0
    %1277 = vmatpush1.msra.mxu0 0.0
    %1278 = vmatprep.subr.mxu0 0.0
    %1279 = vmatpush1.msra.mxu0 0.0
    %1280 = vmatprep.subr.mxu0 0.0
    %1281 = vmatpush1.msra.mxu0 0.0
    %1282 = vmatprep.subr.mxu0 0.0
    %1283 = vmatpush1.msra.mxu0 0.0
    %1284 = vmatprep.subr.mxu0 0.0
    %1285 = vmatpush1.msra.mxu0 0.0
    %1286 = vmatprep.subr.mxu0 0.0
    %1287 = vmatpush1.msra.mxu0 0.0
    %1288 = vmatprep.subr.mxu0 0.0
    %1289 = vmatpush1.msra.mxu0 0.0
    %1290 = vmatprep.subr.mxu0 0.0
    %1291 = vmatpush1.msra.mxu0 0.0
    %1292 = vmatprep.subr.mxu0 0.0
    %1293 = vmatpush1.msra.mxu0 0.0
    %1294 = vmatprep.subr.mxu0 0.0
    %1295 = vmatpush1.msra.mxu0 0.0
    %1296 = vmatprep.subr.mxu0 0.0
    %1297 = vmatpush1.msra.mxu0 0.0
    %1298 = vmatprep.subr.mxu0 0.0
    %1299 = vmatpush1.msra.mxu0 0.0
    %1300 = vmatprep.subr.mxu0 0.0
    %1301 = vmatpush1.msra.mxu0 0.0
    %1302 = vmatprep.subr.mxu0 0.0
    %1303 = vmatpush1.msra.mxu0 0.0
    %1304 = vmatprep.subr.mxu0 0.0
    %1305 = vmatpush1.msra.mxu0 0.0
    %1306 = vmatprep.subr.mxu0 0.0
    %1307 = vmatpush1.msra.mxu0 0.0
    %1308 = vmatprep.subr.mxu0 0.0
    %1309 = vmatpush1.msra.mxu0 0.0
    %1310 = vmatprep.subr.mxu0 0.0
    %1311 = vmatpush1.msra.mxu0 0.0
    %1312 = vmatprep.subr.mxu0 0.0
    %1313 = vmatpush1.msra.mxu0 0.0
    %1314 = vmatprep.subr.mxu0 0.0
    %1315 = vmatpush1.msra.mxu0 0.0
    %1316 = vmatprep.subr.mxu0 0.0
    %1317 = vmatpush1.msra.mxu0 0.0
    %1318 = vmatprep.subr.mxu0 0.0
    %1319 = vmatpush1.msra.mxu0 0.0
    %1320 = vmatprep.subr.mxu0 0.0
    %1321 = vmatpush1.msra.mxu0 0.0
    %1322 = vmatprep.subr.mxu0 0.0
    %1323 = vmatpush1.msra.mxu0 0.0
    %1324 = vmatprep.subr.mxu0 0.0
    %1325 = vmatpush1.msra.mxu0 0.0
    %1326 = vmatprep.subr.mxu0 0.0
    %1327 = vmatpush1.msra.mxu0 0.0
    %1328 = vmatprep.mubr.f32.mxu0 0.0
    %v1329 = vand.u32 %v53, 4294901760
    %1330 = vmatmul.mubr.f32.gmra.mrb[0].mxu0 %v1329
    %v1331 = vpop.f32.mrb[0].mxu0
    %v1332 = vadd.f32 %v1241, %v1331
    %v1333 = vpop.f32.mrb[0].mxu0
    %1334 = vdwg.mxu0
    %1335 = vmatprep.subr.mxu0 0.0
    %v1336 = vand.u32 %v1154, 4294901760
    %v1337 = vsub.f32 %v1154, %v1336
    %1338 = vmatpush1.msra.mxu0 %v1337
    %1339 = vmatprep.subr.mxu0 0.0
    %v1340 = vand.u32 %v1155, 4294901760
    %v1341 = vsub.f32 %v1155, %v1340
    %1342 = vmatpush1.msra.mxu0 %v1341
    %1343 = vmatprep.subr.mxu0 0.0
    %v1344 = vand.u32 %v1156, 4294901760
    %v1345 = vsub.f32 %v1156, %v1344
    %1346 = vmatpush1.msra.mxu0 %v1345
    %1347 = vmatprep.subr.mxu0 0.0
    %v1348 = vand.u32 %v1157, 4294901760
    %v1349 = vsub.f32 %v1157, %v1348
    %1350 = vmatpush1.msra.mxu0 %v1349
    %1351 = vmatprep.subr.mxu0 0.0
    %1352 = vmatpush1.msra.mxu0 0.0
    %1353 = vmatprep.subr.mxu0 0.0
    %1354 = vmatpush1.msra.mxu0 0.0
    %1355 = vmatprep.subr.mxu0 0.0
    %1356 = vmatpush1.msra.mxu0 0.0
    %1357 = vmatprep.subr.mxu0 0.0
    %1358 = vmatpush1.msra.mxu0 0.0
    %1359 = vmatprep.subr.mxu0 0.0
    %1360 = vmatpush1.msra.mxu0 0.0
    %1361 = vmatprep.subr.mxu0 0.0
    %1362 = vmatpush1.msra.mxu0 0.0
    %1363 = vmatprep.subr.mxu0 0.0
    %1364 = vmatpush1.msra.mxu0 0.0
    %1365 = vmatprep.subr.mxu0 0.0
    %1366 = vmatpush1.msra.mxu0 0.0
    %1367 = vmatprep.subr.mxu0 0.0
    %1368 = vmatpush1.msra.mxu0 0.0
    %1369 = vmatprep.subr.mxu0 0.0
    %1370 = vmatpush1.msra.mxu0 0.0
    %1371 = vmatprep.subr.mxu0 0.0
    %1372 = vmatpush1.msra.mxu0 0.0
    %1373 = vmatprep.subr.mxu0 0.0
    %1374 = vmatpush1.msra.mxu0 0.0
    %1375 = vmatprep.subr.mxu0 0.0
    %1376 = vmatpush1.msra.mxu0 0.0
    %1377 = vmatprep.subr.mxu0 0.0
    %1378 = vmatpush1.msra.mxu0 0.0
    %1379 = vmatprep.subr.mxu0 0.0
    %1380 = vmatpush1.msra.mxu0 0.0
    %1381 = vmatprep.subr.mxu0 0.0
    %1382 = vmatpush1.msra.mxu0 0.0
    %1383 = vmatprep.subr.mxu0 0.0
    %1384 = vmatpush1.msra.mxu0 0.0
    %1385 = vmatprep.subr.mxu0 0.0
    %1386 = vmatpush1.msra.mxu0 0.0
    %1387 = vmatprep.subr.mxu0 0.0
    %1388 = vmatpush1.msra.mxu0 0.0
    %1389 = vmatprep.subr.mxu0 0.0
    %1390 = vmatpush1.msra.mxu0 0.0
    %1391 = vmatprep.subr.mxu0 0.0
    %1392 = vmatpush1.msra.mxu0 0.0
    %1393 = vmatprep.subr.mxu0 0.0
    %1394 = vmatpush1.msra.mxu0 0.0
    %1395 = vmatprep.subr.mxu0 0.0
    %1396 = vmatpush1.msra.mxu0 0.0
    %1397 = vmatprep.subr.mxu0 0.0
    %1398 = vmatpush1.msra.mxu0 0.0
    %1399 = vmatprep.subr.mxu0 0.0
    %1400 = vmatpush1.msra.mxu0 0.0
    %1401 = vmatprep.subr.mxu0 0.0
    %1402 = vmatpush1.msra.mxu0 0.0
    %1403 = vmatprep.subr.mxu0 0.0
    %1404 = vmatpush1.msra.mxu0 0.0
    %1405 = vmatprep.subr.mxu0 0.0
    %1406 = vmatpush1.msra.mxu0 0.0
    %1407 = vmatprep.mubr.f32.mxu0 0.0
    %v1408 = vand.u32 %v53, 4294901760
    %v1409 = vsub.f32 %v53, %v1408
    %1410 = vmatmul.mubr.f32.gmra.mrb[0].mxu0 %v1409
    %v1411 = vpop.f32.mrb[0].mxu0
    %v1412 = vadd.f32 %v1332, %v1411
    %v1413 = vpop.f32.mrb[0].mxu0
    %1414 = vdwg.mxu0
    %1415 = vmatprep.subr.mxu0 0.0
    %v1416 = vand.u32 %v1154, 4294901760
    %1417 = vmatpush1.msra.mxu0 %v1416
    %1418 = vmatprep.subr.mxu0 0.0
    %v1419 = vand.u32 %v1155, 4294901760
    %1420 = vmatpush1.msra.mxu0 %v1419
    %1421 = vmatprep.subr.mxu0 0.0
    %v1422 = vand.u32 %v1156, 4294901760
    %1423 = vmatpush1.msra.mxu0 %v1422
    %1424 = vmatprep.subr.mxu0 0.0
    %v1425 = vand.u32 %v1157, 4294901760
    %1426 = vmatpush1.msra.mxu0 %v1425
    %1427 = vmatprep.subr.mxu0 0.0
    %1428 = vmatpush1.msra.mxu0 0.0
    %1429 = vmatprep.subr.mxu0 0.0
    %1430 = vmatpush1.msra.mxu0 0.0
    %1431 = vmatprep.subr.mxu0 0.0
    %1432 = vmatpush1.msra.mxu0 0.0
    %1433 = vmatprep.subr.mxu0 0.0
    %1434 = vmatpush1.msra.mxu0 0.0
    %1435 = vmatprep.subr.mxu0 0.0
    %1436 = vmatpush1.msra.mxu0 0.0
    %1437 = vmatprep.subr.mxu0 0.0
    %1438 = vmatpush1.msra.mxu0 0.0
    %1439 = vmatprep.subr.mxu0 0.0
    %1440 = vmatpush1.msra.mxu0 0.0
    %1441 = vmatprep.subr.mxu0 0.0
    %1442 = vmatpush1.msra.mxu0 0.0
    %1443 = vmatprep.subr.mxu0 0.0
    %1444 = vmatpush1.msra.mxu0 0.0
    %1445 = vmatprep.subr.mxu0 0.0
    %1446 = vmatpush1.msra.mxu0 0.0
    %1447 = vmatprep.subr.mxu0 0.0
    %1448 = vmatpush1.msra.mxu0 0.0
    %1449 = vmatprep.subr.mxu0 0.0
    %1450 = vmatpush1.msra.mxu0 0.0
    %1451 = vmatprep.subr.mxu0 0.0
    %1452 = vmatpush1.msra.mxu0 0.0
    %1453 = vmatprep.subr.mxu0 0.0
    %1454 = vmatpush1.msra.mxu0 0.0
    %1455 = vmatprep.subr.mxu0 0.0
    %1456 = vmatpush1.msra.mxu0 0.0
    %1457 = vmatprep.subr.mxu0 0.0
    %1458 = vmatpush1.msra.mxu0 0.0
    %1459 = vmatprep.subr.mxu0 0.0
    %1460 = vmatpush1.msra.mxu0 0.0
    %1461 = vmatprep.subr.mxu0 0.0
    %1462 = vmatpush1.msra.mxu0 0.0
    %1463 = vmatprep.subr.mxu0 0.0
    %1464 = vmatpush1.msra.mxu0 0.0
    %1465 = vmatprep.subr.mxu0 0.0
    %1466 = vmatpush1.msra.mxu0 0.0
    %1467 = vmatprep.subr.mxu0 0.0
    %1468 = vmatpush1.msra.mxu0 0.0
    %1469 = vmatprep.subr.mxu0 0.0
    %1470 = vmatpush1.msra.mxu0 0.0
    %1471 = vmatprep.subr.mxu0 0.0
    %1472 = vmatpush1.msra.mxu0 0.0
    %1473 = vmatprep.subr.mxu0 0.0
    %1474 = vmatpush1.msra.mxu0 0.0
    %1475 = vmatprep.subr.mxu0 0.0
    %1476 = vmatpush1.msra.mxu0 0.0
    %1477 = vmatprep.subr.mxu0 0.0
    %1478 = vmatpush1.msra.mxu0 0.0
    %1479 = vmatprep.subr.mxu0 0.0
    %1480 = vmatpush1.msra.mxu0 0.0
    %1481 = vmatprep.subr.mxu0 0.0
    %1482 = vmatpush1.msra.mxu0 0.0
    %1483 = vmatprep.mubr.f32.mxu0 0.0
    %v1484 = vand.u32 %v53, 4294901760
    %v1485 = vsub.f32 %v53, %v1484
    %v1486 = vand.u32 %v1485, 4294901760
    %1487 = vmatmul.mubr.f32.gmra.mrb[0].mxu0 %v1486
    %v1488 = vpop.f32.mrb[0].mxu0
    %v1489 = vadd.f32 %v1412, %v1488
    %v1490 = vpop.f32.mrb[0].mxu0
    %1491 = vdwg.mxu0
    %1492 = vmatprep.subr.mxu0 0.0
    %v1493 = vand.u32 %v1154, 4294901760
    %v1494 = vsub.f32 %v1154, %v1493
    %v1495 = vand.u32 %v1494, 4294901760
    %1496 = vmatpush1.msra.mxu0 %v1495
    %1497 = vmatprep.subr.mxu0 0.0
    %v1498 = vand.u32 %v1155, 4294901760
    %v1499 = vsub.f32 %v1155, %v1498
    %v1500 = vand.u32 %v1499, 4294901760
    %1501 = vmatpush1.msra.mxu0 %v1500
    %1502 = vmatprep.subr.mxu0 0.0
    %v1503 = vand.u32 %v1156, 4294901760
    %v1504 = vsub.f32 %v1156, %v1503
    %v1505 = vand.u32 %v1504, 4294901760
    %1506 = vmatpush1.msra.mxu0 %v1505
    %1507 = vmatprep.subr.mxu0 0.0
    %v1508 = vand.u32 %v1157, 4294901760
    %v1509 = vsub.f32 %v1157, %v1508
    %v1510 = vand.u32 %v1509, 4294901760
    %1511 = vmatpush1.msra.mxu0 %v1510
    %1512 = vmatprep.subr.mxu0 0.0
    %1513 = vmatpush1.msra.mxu0 0.0
    %1514 = vmatprep.subr.mxu0 0.0
    %1515 = vmatpush1.msra.mxu0 0.0
    %1516 = vmatprep.subr.mxu0 0.0
    %1517 = vmatpush1.msra.mxu0 0.0
    %1518 = vmatprep.subr.mxu0 0.0
    %1519 = vmatpush1.msra.mxu0 0.0
    %1520 = vmatprep.subr.mxu0 0.0
    %1521 = vmatpush1.msra.mxu0 0.0
    %1522 = vmatprep.subr.mxu0 0.0
    %1523 = vmatpush1.msra.mxu0 0.0
    %1524 = vmatprep.subr.mxu0 0.0
    %1525 = vmatpush1.msra.mxu0 0.0
    %1526 = vmatprep.subr.mxu0 0.0
    %1527 = vmatpush1.msra.mxu0 0.0
    %1528 = vmatprep.subr.mxu0 0.0
    %1529 = vmatpush1.msra.mxu0 0.0
    %1530 = vmatprep.subr.mxu0 0.0
    %1531 = vmatpush1.msra.mxu0 0.0
    %1532 = vmatprep.subr.mxu0 0.0
    %1533 = vmatpush1.msra.mxu0 0.0
    %1534 = vmatprep.subr.mxu0 0.0
    %1535 = vmatpush1.msra.mxu0 0.0
    %1536 = vmatprep.subr.mxu0 0.0
    %1537 = vmatpush1.msra.mxu0 0.0
    %1538 = vmatprep.subr.mxu0 0.0
    %1539 = vmatpush1.msra.mxu0 0.0
    %1540 = vmatprep.subr.mxu0 0.0
    %1541 = vmatpush1.msra.mxu0 0.0
    %1542 = vmatprep.subr.mxu0 0.0
    %1543 = vmatpush1.msra.mxu0 0.0
    %1544 = vmatprep.subr.mxu0 0.0
    %1545 = vmatpush1.msra.mxu0 0.0
    %1546 = vmatprep.subr.mxu0 0.0
    %1547 = vmatpush1.msra.mxu0 0.0
    %1548 = vmatprep.subr.mxu0 0.0
    %1549 = vmatpush1.msra.mxu0 0.0
    %1550 = vmatprep.subr.mxu0 0.0
    %1551 = vmatpush1.msra.mxu0 0.0
    %1552 = vmatprep.subr.mxu0 0.0
    %1553 = vmatpush1.msra.mxu0 0.0
    %1554 = vmatprep.subr.mxu0 0.0
    %1555 = vmatpush1.msra.mxu0 0.0
    %1556 = vmatprep.subr.mxu0 0.0
    %1557 = vmatpush1.msra.mxu0 0.0
    %1558 = vmatprep.subr.mxu0 0.0
    %1559 = vmatpush1.msra.mxu0 0.0
    %1560 = vmatprep.subr.mxu0 0.0
    %1561 = vmatpush1.msra.mxu0 0.0
    %1562 = vmatprep.subr.mxu0 0.0
    %1563 = vmatpush1.msra.mxu0 0.0
    %1564 = vmatprep.subr.mxu0 0.0
    %1565 = vmatpush1.msra.mxu0 0.0
    %1566 = vmatprep.subr.mxu0 0.0
    %1567 = vmatpush1.msra.mxu0 0.0
    %1568 = vmatprep.mubr.f32.mxu0 0.0
    %v1569 = vand.u32 %v53, 4294901760
    %1570 = vmatmul.mubr.f32.gmra.mrb[0].mxu0 %v1569
    %v1571 = vpop.f32.mrb[0].mxu0
    %v1572 = vadd.f32 %v1489, %v1571
    %v1573 = vpop.f32.mrb[0].mxu0
    %1574 = vdwg.mxu0
    %1575 = vmatprep.subr.mxu0 0.0
    %v1576 = vand.u32 %v1154, 4294901760
    %1577 = vmatpush1.msra.mxu0 %v1576
    %1578 = vmatprep.subr.mxu0 0.0
    %v1579 = vand.u32 %v1155, 4294901760
    %1580 = vmatpush1.msra.mxu0 %v1579
    %1581 = vmatprep.subr.mxu0 0.0
    %v1582 = vand.u32 %v1156, 4294901760
    %1583 = vmatpush1.msra.mxu0 %v1582
    %1584 = vmatprep.subr.mxu0 0.0
    %v1585 = vand.u32 %v1157, 4294901760
    %1586 = vmatpush1.msra.mxu0 %v1585
    %1587 = vmatprep.subr.mxu0 0.0
    %1588 = vmatpush1.msra.mxu0 0.0
    %1589 = vmatprep.subr.mxu0 0.0
    %1590 = vmatpush1.msra.mxu0 0.0
    %1591 = vmatprep.subr.mxu0 0.0
    %1592 = vmatpush1.msra.mxu0 0.0
    %1593 = vmatprep.subr.mxu0 0.0
    %1594 = vmatpush1.msra.mxu0 0.0
    %1595 = vmatprep.subr.mxu0 0.0
    %1596 = vmatpush1.msra.mxu0 0.0
    %1597 = vmatprep.subr.mxu0 0.0
    %1598 = vmatpush1.msra.mxu0 0.0
    %1599 = vmatprep.subr.mxu0 0.0
    %1600 = vmatpush1.msra.mxu0 0.0
    %1601 = vmatprep.subr.mxu0 0.0
    %1602 = vmatpush1.msra.mxu0 0.0
    %1603 = vmatprep.subr.mxu0 0.0
    %1604 = vmatpush1.msra.mxu0 0.0
    %1605 = vmatprep.subr.mxu0 0.0
    %1606 = vmatpush1.msra.mxu0 0.0
    %1607 = vmatprep.subr.mxu0 0.0
    %1608 = vmatpush1.msra.mxu0 0.0
    %1609 = vmatprep.subr.mxu0 0.0
    %1610 = vmatpush1.msra.mxu0 0.0
    %1611 = vmatprep.subr.mxu0 0.0
    %1612 = vmatpush1.msra.mxu0 0.0
    %1613 = vmatprep.subr.mxu0 0.0
    %1614 = vmatpush1.msra.mxu0 0.0
    %1615 = vmatprep.subr.mxu0 0.0
    %1616 = vmatpush1.msra.mxu0 0.0
    %1617 = vmatprep.subr.mxu0 0.0
    %1618 = vmatpush1.msra.mxu0 0.0
    %1619 = vmatprep.subr.mxu0 0.0
    %1620 = vmatpush1.msra.mxu0 0.0
    %1621 = vmatprep.subr.mxu0 0.0
    %1622 = vmatpush1.msra.mxu0 0.0
    %1623 = vmatprep.subr.mxu0 0.0
    %1624 = vmatpush1.msra.mxu0 0.0
    %1625 = vmatprep.subr.mxu0 0.0
    %1626 = vmatpush1.msra.mxu0 0.0
    %1627 = vmatprep.subr.mxu0 0.0
    %1628 = vmatpush1.msra.mxu0 0.0
    %1629 = vmatprep.subr.mxu0 0.0
    %1630 = vmatpush1.msra.mxu0 0.0
    %1631 = vmatprep.subr.mxu0 0.0
    %1632 = vmatpush1.msra.mxu0 0.0
    %1633 = vmatprep.subr.mxu0 0.0
    %1634 = vmatpush1.msra.mxu0 0.0
    %1635 = vmatprep.subr.mxu0 0.0
    %1636 = vmatpush1.msra.mxu0 0.0
    %1637 = vmatprep.subr.mxu0 0.0
    %1638 = vmatpush1.msra.mxu0 0.0
    %1639 = vmatprep.subr.mxu0 0.0
    %1640 = vmatpush1.msra.mxu0 0.0
    %1641 = vmatprep.subr.mxu0 0.0
    %1642 = vmatpush1.msra.mxu0 0.0
    %1643 = vmatprep.mubr.f32.mxu0 0.0
    %v1644 = vand.u32 %v53, 4294901760
    %1645 = vmatmul.mubr.f32.gmra.mrb[0].mxu0 %v1644
    %v1646 = vpop.f32.mrb[0].mxu0
    %v1647 = vadd.f32 %v1572, %v1646
    %v1648 = vpop.f32.mrb[0].mxu0
    %1649 = vdwg.mxu0
    %vm1650 = vcmask 23552
    %v1651 = vsel %vm1650, %v1647, -inf
    %1652 = vmax.xlane.f32.xlu0 %v1651
    %v1653 = vpop.xlane.xlu0 %1652
    %v1654 = vsub.f32 %v1647, %v1653
    %v1655 = vmul.f32 %v1654, 1.442695
    %v1656 = vpow.pop %v1655
    %v1657 = vsel %vm1650, %v1656, 0.0
    %1658 = vadd.xlane.f32.xlu0 %v1657
    %v1659 = vpop.xlane.xlu0 %1658
    %v1660 = vrcp.pop %v1659
    %v1661 = vmul.f32 %v1656, %v1660
    %1663 = vset.pattern.permute.xlu0 0
    %1664 = vperm.xlu0 %1663, %v1661
    %v1665 = vpop.permute.xlu0 %1664
    %v1667 = vmul.f32 %v1665, %v1153
    %1668 = vset.pattern.permute.xlu0 1
    %1669 = vperm.xlu0 %1668, %v1661
    %v1670 = vpop.permute.xlu0 %1669
    %v1672 = vmul.f32 %v1670, %v1153
    %1674 = vrot.lane.b32.xlu0 %v1672, 112
    %v1675 = vpop.permute.xlu0 %1674
    %v1677 = vadd.f32 %v1667, %v1675
    %1678 = vset.pattern.permute.xlu0 2
    %1679 = vperm.xlu0 %1678, %v1661
    %v1680 = vpop.permute.xlu0 %1679
    %v1682 = vmul.f32 %v1680, %v1153
    %1684 = vrot.lane.b32.xlu0 %v1682, 96
    %v1685 = vpop.permute.xlu0 %1684
    %v1687 = vadd.f32 %v1677, %v1685
    %vm1688 = vcmask 48152
    %v1689 = vsel %vm1688, %v1647, -inf
    %1690 = vmax.xlane.f32.xlu0 %v1689
    %v1691 = vpop.xlane.xlu0 %1690
    %v1692 = vsub.f32 %v1647, %v1691
    %v1693 = vmul.f32 %v1692, 1.442695
    %v1694 = vpow.pop %v1693
    %1696 = vrot.lane.b32.xlu0 %v1694, 125
    %v1697 = vpop.permute.xlu0 %1696
    %v1699 = vsel %vm1650, %v1697, 0.0
    %1700 = vadd.xlane.f32.xlu0 %v1699
    %v1701 = vpop.xlane.xlu0 %1700
    %v1702 = vrcp.pop %v1701
    %v1703 = vmul.f32 %v1694, %v1702
    %1705 = vset.pattern.permute.xlu0 3
    %1706 = vperm.xlu0 %1705, %v1703
    %v1707 = vpop.permute.xlu0 %1706
    %v1709 = vmul.f32 %v1707, %v1153
    %1710 = vset.pattern.permute.xlu0 4
    %1711 = vperm.xlu0 %1710, %v1703
    %v1712 = vpop.permute.xlu0 %1711
    %v1714 = vmul.f32 %v1712, %v1153
    %1716 = vrot.lane.b32.xlu0 %v1714, 112
    %v1717 = vpop.permute.xlu0 %1716
    %v1719 = vadd.f32 %v1709, %v1717
    %1720 = vset.pattern.permute.xlu0 5
    %1721 = vperm.xlu0 %1720, %v1703
    %v1722 = vpop.permute.xlu0 %1721
    %v1724 = vmul.f32 %v1722, %v1153
    %1726 = vrot.lane.b32.xlu0 %v1724, 96
    %v1727 = vpop.permute.xlu0 %1726
    %v1729 = vadd.f32 %v1719, %v1727
    %1731 = vrot.lane.b32.xlu0 %v1729, 16
    %v1732 = vpop.permute.xlu0 %1731
    %vm1734 = vcmask 130048
    %v1735 = vsel %vm1734, %v1687, %v1732
    %v1736 = vld [vmem:[%s7] sm:$0xff]
    %v1737 = vld [vmem:[%s7 + $0x8] sm:$0xff]
    %v1738 = vld [vmem:[%s7 + $0x10] sm:$0xff]
    %v1739 = vld [vmem:[%s7 + $0x18] sm:$0xff]
    %v1740 = vld [vmem:[%s8] sm:$0x1]
    %v1742 = vlaneseq
    %v1743 = vshrl.u32 %v1742, 7
    %v1744 = vsub.s32 0, %v1743
    %v1745 = vrot.slane %v1740, %v1744
    %v1748 = vsel %vm51, %v1735, 0
    %1750 = vmatprep.subr.mxu0 0.0
    %v1751 = vand.u32 %v1736, 4294901760
    %1752 = vmatpush1.msra.mxu0 %v1751
    %1753 = vmatprep.subr.mxu0 0.0
    %v1754 = vand.u32 %v1737, 4294901760
    %1755 = vmatpush1.msra.mxu0 %v1754
    %1756 = vmatprep.subr.mxu0 0.0
    %v1757 = vand.u32 %v1738, 4294901760
    %1758 = vmatpush1.msra.mxu0 %v1757
    %1759 = vmatprep.subr.mxu0 0.0
    %v1760 = vand.u32 %v1739, 4294901760
    %1761 = vmatpush1.msra.mxu0 %v1760
    %1762 = vmatprep.subr.mxu0 0.0
    %1763 = vmatpush1.msra.mxu0 0.0
    %1764 = vmatprep.subr.mxu0 0.0
    %1765 = vmatpush1.msra.mxu0 0.0
    %1766 = vmatprep.subr.mxu0 0.0
    %1767 = vmatpush1.msra.mxu0 0.0
    %1768 = vmatprep.subr.mxu0 0.0
    %1769 = vmatpush1.msra.mxu0 0.0
    %1770 = vmatprep.subr.mxu0 0.0
    %1771 = vmatpush1.msra.mxu0 0.0
    %1772 = vmatprep.subr.mxu0 0.0
    %1773 = vmatpush1.msra.mxu0 0.0
    %1774 = vmatprep.subr.mxu0 0.0
    %1775 = vmatpush1.msra.mxu0 0.0
    %1776 = vmatprep.subr.mxu0 0.0
    %1777 = vmatpush1.msra.mxu0 0.0
    %1778 = vmatprep.subr.mxu0 0.0
    %1779 = vmatpush1.msra.mxu0 0.0
    %1780 = vmatprep.subr.mxu0 0.0
    %1781 = vmatpush1.msra.mxu0 0.0
    %1782 = vmatprep.subr.mxu0 0.0
    %1783 = vmatpush1.msra.mxu0 0.0
    %1784 = vmatprep.subr.mxu0 0.0
    %1785 = vmatpush1.msra.mxu0 0.0
    %1786 = vmatprep.subr.mxu0 0.0
    %1787 = vmatpush1.msra.mxu0 0.0
    %1788 = vmatprep.subr.mxu0 0.0
    %1789 = vmatpush1.msra.mxu0 0.0
    %1790 = vmatprep.subr.mxu0 0.0
    %1791 = vmatpush1.msra.mxu0 0.0
    %1792 = vmatprep.subr.mxu0 0.0
    %1793 = vmatpush1.msra.mxu0 0.0
    %1794 = vmatprep.subr.mxu0 0.0
    %1795 = vmatpush1.msra.mxu0 0.0
    %1796 = vmatprep.subr.mxu0 0.0
    %1797 = vmatpush1.msra.mxu0 0.0
    %1798 = vmatprep.subr.mxu0 0.0
    %1799 = vmatpush1.msra.mxu0 0.0
    %1800 = vmatprep.subr.mxu0 0.0
    %1801 = vmatpush1.msra.mxu0 0.0
    %1802 = vmatprep.subr.mxu0 0.0
    %1803 = vmatpush1.msra.mxu0 0.0
    %1804 = vmatprep.subr.mxu0 0.0
    %1805 = vmatpush1.msra.mxu0 0.0
    %1806 = vmatprep.subr.mxu0 0.0
    %1807 = vmatpush1.msra.mxu0 0.0
    %1808 = vmatprep.subr.mxu0 0.0
    %1809 = vmatpush1.msra.mxu0 0.0
    %1810 = vmatprep.subr.mxu0 0.0
    %1811 = vmatpush1.msra.mxu0 0.0
    %1812 = vmatprep.subr.mxu0 0.0
    %1813 = vmatpush1.msra.mxu0 0.0
    %1814 = vmatprep.subr.mxu0 0.0
    %1815 = vmatpush1.msra.mxu0 0.0
    %1816 = vmatprep.subr.mxu0 0.0
    %1817 = vmatpush1.msra.mxu0 0.0
    %1818 = vmatprep.mubr.f32.mxu0 0.0
    %v1819 = vand.u32 %v1748, 4294901760
    %v1820 = vsub.f32 %v1748, %v1819
    %v1821 = vand.u32 %v1820, 4294901760
    %v1822 = vsub.f32 %v1820, %v1821
    %v1823 = vand.u32 %v1822, 4294901760
    %1824 = vmatmul.mubr.f32.gmra.mrb[0].mxu0 %v1823
    %v1825 = vpop.f32.mrb[0].mxu0
    %v1826 = vadd.f32 %v1745, %v1825
    %v1827 = vpop.f32.mrb[0].mxu0
    %1828 = vdwg.mxu0
    %1829 = vmatprep.subr.mxu0 0.0
    %v1830 = vand.u32 %v1736, 4294901760
    %v1831 = vsub.f32 %v1736, %v1830
    %v1832 = vand.u32 %v1831, 4294901760
    %v1833 = vsub.f32 %v1831, %v1832
    %v1834 = vand.u32 %v1833, 4294901760
    %1835 = vmatpush1.msra.mxu0 %v1834
    %1836 = vmatprep.subr.mxu0 0.0
    %v1837 = vand.u32 %v1737, 4294901760
    %v1838 = vsub.f32 %v1737, %v1837
    %v1839 = vand.u32 %v1838, 4294901760
    %v1840 = vsub.f32 %v1838, %v1839
    %v1841 = vand.u32 %v1840, 4294901760
    %1842 = vmatpush1.msra.mxu0 %v1841
    %1843 = vmatprep.subr.mxu0 0.0
    %v1844 = vand.u32 %v1738, 4294901760
    %v1845 = vsub.f32 %v1738, %v1844
    %v1846 = vand.u32 %v1845, 4294901760
    %v1847 = vsub.f32 %v1845, %v1846
    %v1848 = vand.u32 %v1847, 4294901760
    %1849 = vmatpush1.msra.mxu0 %v1848
    %1850 = vmatprep.subr.mxu0 0.0
    %v1851 = vand.u32 %v1739, 4294901760
    %v1852 = vsub.f32 %v1739, %v1851
    %v1853 = vand.u32 %v1852, 4294901760
    %v1854 = vsub.f32 %v1852, %v1853
    %v1855 = vand.u32 %v1854, 4294901760
    %1856 = vmatpush1.msra.mxu0 %v1855
    %1857 = vmatprep.subr.mxu0 0.0
    %1858 = vmatpush1.msra.mxu0 0.0
    %1859 = vmatprep.subr.mxu0 0.0
    %1860 = vmatpush1.msra.mxu0 0.0
    %1861 = vmatprep.subr.mxu0 0.0
    %1862 = vmatpush1.msra.mxu0 0.0
    %1863 = vmatprep.subr.mxu0 0.0
    %1864 = vmatpush1.msra.mxu0 0.0
    %1865 = vmatprep.subr.mxu0 0.0
    %1866 = vmatpush1.msra.mxu0 0.0
    %1867 = vmatprep.subr.mxu0 0.0
    %1868 = vmatpush1.msra.mxu0 0.0
    %1869 = vmatprep.subr.mxu0 0.0
    %1870 = vmatpush1.msra.mxu0 0.0
    %1871 = vmatprep.subr.mxu0 0.0
    %1872 = vmatpush1.msra.mxu0 0.0
    %1873 = vmatprep.subr.mxu0 0.0
    %1874 = vmatpush1.msra.mxu0 0.0
    %1875 = vmatprep.subr.mxu0 0.0
    %1876 = vmatpush1.msra.mxu0 0.0
    %1877 = vmatprep.subr.mxu0 0.0
    %1878 = vmatpush1.msra.mxu0 0.0
    %1879 = vmatprep.subr.mxu0 0.0
    %1880 = vmatpush1.msra.mxu0 0.0
    %1881 = vmatprep.subr.mxu0 0.0
    %1882 = vmatpush1.msra.mxu0 0.0
    %1883 = vmatprep.subr.mxu0 0.0
    %1884 = vmatpush1.msra.mxu0 0.0
    %1885 = vmatprep.subr.mxu0 0.0
    %1886 = vmatpush1.msra.mxu0 0.0
    %1887 = vmatprep.subr.mxu0 0.0
    %1888 = vmatpush1.msra.mxu0 0.0
    %1889 = vmatprep.subr.mxu0 0.0
    %1890 = vmatpush1.msra.mxu0 0.0
    %1891 = vmatprep.subr.mxu0 0.0
    %1892 = vmatpush1.msra.mxu0 0.0
    %1893 = vmatprep.subr.mxu0 0.0
    %1894 = vmatpush1.msra.mxu0 0.0
    %1895 = vmatprep.subr.mxu0 0.0
    %1896 = vmatpush1.msra.mxu0 0.0
    %1897 = vmatprep.subr.mxu0 0.0
    %1898 = vmatpush1.msra.mxu0 0.0
    %1899 = vmatprep.subr.mxu0 0.0
    %1900 = vmatpush1.msra.mxu0 0.0
    %1901 = vmatprep.subr.mxu0 0.0
    %1902 = vmatpush1.msra.mxu0 0.0
    %1903 = vmatprep.subr.mxu0 0.0
    %1904 = vmatpush1.msra.mxu0 0.0
    %1905 = vmatprep.subr.mxu0 0.0
    %1906 = vmatpush1.msra.mxu0 0.0
    %1907 = vmatprep.subr.mxu0 0.0
    %1908 = vmatpush1.msra.mxu0 0.0
    %1909 = vmatprep.subr.mxu0 0.0
    %1910 = vmatpush1.msra.mxu0 0.0
    %1911 = vmatprep.subr.mxu0 0.0
    %1912 = vmatpush1.msra.mxu0 0.0
    %1913 = vmatprep.mubr.f32.mxu0 0.0
    %v1914 = vand.u32 %v1748, 4294901760
    %1915 = vmatmul.mubr.f32.gmra.mrb[0].mxu0 %v1914
    %v1916 = vpop.f32.mrb[0].mxu0
    %v1917 = vadd.f32 %v1826, %v1916
    %v1918 = vpop.f32.mrb[0].mxu0
    %1919 = vdwg.mxu0
    %1920 = vmatprep.subr.mxu0 0.0
    %v1921 = vand.u32 %v1736, 4294901760
    %v1922 = vsub.f32 %v1736, %v1921
    %1923 = vmatpush1.msra.mxu0 %v1922
    %1924 = vmatprep.subr.mxu0 0.0
    %v1925 = vand.u32 %v1737, 4294901760
    %v1926 = vsub.f32 %v1737, %v1925
    %1927 = vmatpush1.msra.mxu0 %v1926
    %1928 = vmatprep.subr.mxu0 0.0
    %v1929 = vand.u32 %v1738, 4294901760
    %v1930 = vsub.f32 %v1738, %v1929
    %1931 = vmatpush1.msra.mxu0 %v1930
    %1932 = vmatprep.subr.mxu0 0.0
    %v1933 = vand.u32 %v1739, 4294901760
    %v1934 = vsub.f32 %v1739, %v1933
    %1935 = vmatpush1.msra.mxu0 %v1934
    %1936 = vmatprep.subr.mxu0 0.0
    %1937 = vmatpush1.msra.mxu0 0.0
    %1938 = vmatprep.subr.mxu0 0.0
    %1939 = vmatpush1.msra.mxu0 0.0
    %1940 = vmatprep.subr.mxu0 0.0
    %1941 = vmatpush1.msra.mxu0 0.0
    %1942 = vmatprep.subr.mxu0 0.0
    %1943 = vmatpush1.msra.mxu0 0.0
    %1944 = vmatprep.subr.mxu0 0.0
    %1945 = vmatpush1.msra.mxu0 0.0
    %1946 = vmatprep.subr.mxu0 0.0
    %1947 = vmatpush1.msra.mxu0 0.0
    %1948 = vmatprep.subr.mxu0 0.0
    %1949 = vmatpush1.msra.mxu0 0.0
    %1950 = vmatprep.subr.mxu0 0.0
    %1951 = vmatpush1.msra.mxu0 0.0
    %1952 = vmatprep.subr.mxu0 0.0
    %1953 = vmatpush1.msra.mxu0 0.0
    %1954 = vmatprep.subr.mxu0 0.0
    %1955 = vmatpush1.msra.mxu0 0.0
    %1956 = vmatprep.subr.mxu0 0.0
    %1957 = vmatpush1.msra.mxu0 0.0
    %1958 = vmatprep.subr.mxu0 0.0
    %1959 = vmatpush1.msra.mxu0 0.0
    %1960 = vmatprep.subr.mxu0 0.0
    %1961 = vmatpush1.msra.mxu0 0.0
    %1962 = vmatprep.subr.mxu0 0.0
    %1963 = vmatpush1.msra.mxu0 0.0
    %1964 = vmatprep.subr.mxu0 0.0
    %1965 = vmatpush1.msra.mxu0 0.0
    %1966 = vmatprep.subr.mxu0 0.0
    %1967 = vmatpush1.msra.mxu0 0.0
    %1968 = vmatprep.subr.mxu0 0.0
    %1969 = vmatpush1.msra.mxu0 0.0
    %1970 = vmatprep.subr.mxu0 0.0
    %1971 = vmatpush1.msra.mxu0 0.0
    %1972 = vmatprep.subr.mxu0 0.0
    %1973 = vmatpush1.msra.mxu0 0.0
    %1974 = vmatprep.subr.mxu0 0.0
    %1975 = vmatpush1.msra.mxu0 0.0
    %1976 = vmatprep.subr.mxu0 0.0
    %1977 = vmatpush1.msra.mxu0 0.0
    %1978 = vmatprep.subr.mxu0 0.0
    %1979 = vmatpush1.msra.mxu0 0.0
    %1980 = vmatprep.subr.mxu0 0.0
    %1981 = vmatpush1.msra.mxu0 0.0
    %1982 = vmatprep.subr.mxu0 0.0
    %1983 = vmatpush1.msra.mxu0 0.0
    %1984 = vmatprep.subr.mxu0 0.0
    %1985 = vmatpush1.msra.mxu0 0.0
    %1986 = vmatprep.subr.mxu0 0.0
    %1987 = vmatpush1.msra.mxu0 0.0
    %1988 = vmatprep.subr.mxu0 0.0
    %1989 = vmatpush1.msra.mxu0 0.0
    %1990 = vmatprep.subr.mxu0 0.0
    %1991 = vmatpush1.msra.mxu0 0.0
    %1992 = vmatprep.mubr.f32.mxu0 0.0
    %v1993 = vand.u32 %v1748, 4294901760
    %v1994 = vsub.f32 %v1748, %v1993
    %1995 = vmatmul.mubr.f32.gmra.mrb[0].mxu0 %v1994
    %v1996 = vpop.f32.mrb[0].mxu0
    %v1997 = vadd.f32 %v1917, %v1996
    %v1998 = vpop.f32.mrb[0].mxu0
    %1999 = vdwg.mxu0
    %2000 = vmatprep.subr.mxu0 0.0
    %v2001 = vand.u32 %v1736, 4294901760
    %2002 = vmatpush1.msra.mxu0 %v2001
    %2003 = vmatprep.subr.mxu0 0.0
    %v2004 = vand.u32 %v1737, 4294901760
    %2005 = vmatpush1.msra.mxu0 %v2004
    %2006 = vmatprep.subr.mxu0 0.0
    %v2007 = vand.u32 %v1738, 4294901760
    %2008 = vmatpush1.msra.mxu0 %v2007
    %2009 = vmatprep.subr.mxu0 0.0
    %v2010 = vand.u32 %v1739, 4294901760
    %2011 = vmatpush1.msra.mxu0 %v2010
    %2012 = vmatprep.subr.mxu0 0.0
    %2013 = vmatpush1.msra.mxu0 0.0
    %2014 = vmatprep.subr.mxu0 0.0
    %2015 = vmatpush1.msra.mxu0 0.0
    %2016 = vmatprep.subr.mxu0 0.0
    %2017 = vmatpush1.msra.mxu0 0.0
    %2018 = vmatprep.subr.mxu0 0.0
    %2019 = vmatpush1.msra.mxu0 0.0
    %2020 = vmatprep.subr.mxu0 0.0
    %2021 = vmatpush1.msra.mxu0 0.0
    %2022 = vmatprep.subr.mxu0 0.0
    %2023 = vmatpush1.msra.mxu0 0.0
    %2024 = vmatprep.subr.mxu0 0.0
    %2025 = vmatpush1.msra.mxu0 0.0
    %2026 = vmatprep.subr.mxu0 0.0
    %2027 = vmatpush1.msra.mxu0 0.0
    %2028 = vmatprep.subr.mxu0 0.0
    %2029 = vmatpush1.msra.mxu0 0.0
    %2030 = vmatprep.subr.mxu0 0.0
    %2031 = vmatpush1.msra.mxu0 0.0
    %2032 = vmatprep.subr.mxu0 0.0
    %2033 = vmatpush1.msra.mxu0 0.0
    %2034 = vmatprep.subr.mxu0 0.0
    %2035 = vmatpush1.msra.mxu0 0.0
    %2036 = vmatprep.subr.mxu0 0.0
    %2037 = vmatpush1.msra.mxu0 0.0
    %2038 = vmatprep.subr.mxu0 0.0
    %2039 = vmatpush1.msra.mxu0 0.0
    %2040 = vmatprep.subr.mxu0 0.0
    %2041 = vmatpush1.msra.mxu0 0.0
    %2042 = vmatprep.subr.mxu0 0.0
    %2043 = vmatpush1.msra.mxu0 0.0
    %2044 = vmatprep.subr.mxu0 0.0
    %2045 = vmatpush1.msra.mxu0 0.0
    %2046 = vmatprep.subr.mxu0 0.0
    %2047 = vmatpush1.msra.mxu0 0.0
    %2048 = vmatprep.subr.mxu0 0.0
    %2049 = vmatpush1.msra.mxu0 0.0
    %2050 = vmatprep.subr.mxu0 0.0
    %2051 = vmatpush1.msra.mxu0 0.0
    %2052 = vmatprep.subr.mxu0 0.0
    %2053 = vmatpush1.msra.mxu0 0.0
    %2054 = vmatprep.subr.mxu0 0.0
    %2055 = vmatpush1.msra.mxu0 0.0
    %2056 = vmatprep.subr.mxu0 0.0
    %2057 = vmatpush1.msra.mxu0 0.0
    %2058 = vmatprep.subr.mxu0 0.0
    %2059 = vmatpush1.msra.mxu0 0.0
    %2060 = vmatprep.subr.mxu0 0.0
    %2061 = vmatpush1.msra.mxu0 0.0
    %2062 = vmatprep.subr.mxu0 0.0
    %2063 = vmatpush1.msra.mxu0 0.0
    %2064 = vmatprep.subr.mxu0 0.0
    %2065 = vmatpush1.msra.mxu0 0.0
    %2066 = vmatprep.subr.mxu0 0.0
    %2067 = vmatpush1.msra.mxu0 0.0
    %2068 = vmatprep.mubr.f32.mxu0 0.0
    %v2069 = vand.u32 %v1748, 4294901760
    %v2070 = vsub.f32 %v1748, %v2069
    %v2071 = vand.u32 %v2070, 4294901760
    %2072 = vmatmul.mubr.f32.gmra.mrb[0].mxu0 %v2071
    %v2073 = vpop.f32.mrb[0].mxu0
    %v2074 = vadd.f32 %v1997, %v2073
    %v2075 = vpop.f32.mrb[0].mxu0
    %2076 = vdwg.mxu0
    %2077 = vmatprep.subr.mxu0 0.0
    %v2078 = vand.u32 %v1736, 4294901760
    %v2079 = vsub.f32 %v1736, %v2078
    %v2080 = vand.u32 %v2079, 4294901760
    %2081 = vmatpush1.msra.mxu0 %v2080
    %2082 = vmatprep.subr.mxu0 0.0
    %v2083 = vand.u32 %v1737, 4294901760
    %v2084 = vsub.f32 %v1737, %v2083
    %v2085 = vand.u32 %v2084, 4294901760
    %2086 = vmatpush1.msra.mxu0 %v2085
    %2087 = vmatprep.subr.mxu0 0.0
    %v2088 = vand.u32 %v1738, 4294901760
    %v2089 = vsub.f32 %v1738, %v2088
    %v2090 = vand.u32 %v2089, 4294901760
    %2091 = vmatpush1.msra.mxu0 %v2090
    %2092 = vmatprep.subr.mxu0 0.0
    %v2093 = vand.u32 %v1739, 4294901760
    %v2094 = vsub.f32 %v1739, %v2093
    %v2095 = vand.u32 %v2094, 4294901760
    %2096 = vmatpush1.msra.mxu0 %v2095
    %2097 = vmatprep.subr.mxu0 0.0
    %2098 = vmatpush1.msra.mxu0 0.0
    %2099 = vmatprep.subr.mxu0 0.0
    %2100 = vmatpush1.msra.mxu0 0.0
    %2101 = vmatprep.subr.mxu0 0.0
    %2102 = vmatpush1.msra.mxu0 0.0
    %2103 = vmatprep.subr.mxu0 0.0
    %2104 = vmatpush1.msra.mxu0 0.0
    %2105 = vmatprep.subr.mxu0 0.0
    %2106 = vmatpush1.msra.mxu0 0.0
    %2107 = vmatprep.subr.mxu0 0.0
    %2108 = vmatpush1.msra.mxu0 0.0
    %2109 = vmatprep.subr.mxu0 0.0
    %2110 = vmatpush1.msra.mxu0 0.0
    %2111 = vmatprep.subr.mxu0 0.0
    %2112 = vmatpush1.msra.mxu0 0.0
    %2113 = vmatprep.subr.mxu0 0.0
    %2114 = vmatpush1.msra.mxu0 0.0
    %2115 = vmatprep.subr.mxu0 0.0
    %2116 = vmatpush1.msra.mxu0 0.0
    %2117 = vmatprep.subr.mxu0 0.0
    %2118 = vmatpush1.msra.mxu0 0.0
    %2119 = vmatprep.subr.mxu0 0.0
    %2120 = vmatpush1.msra.mxu0 0.0
    %2121 = vmatprep.subr.mxu0 0.0
    %2122 = vmatpush1.msra.mxu0 0.0
    %2123 = vmatprep.subr.mxu0 0.0
    %2124 = vmatpush1.msra.mxu0 0.0
    %2125 = vmatprep.subr.mxu0 0.0
    %2126 = vmatpush1.msra.mxu0 0.0
    %2127 = vmatprep.subr.mxu0 0.0
    %2128 = vmatpush1.msra.mxu0 0.0
    %2129 = vmatprep.subr.mxu0 0.0
    %2130 = vmatpush1.msra.mxu0 0.0
    %2131 = vmatprep.subr.mxu0 0.0
    %2132 = vmatpush1.msra.mxu0 0.0
    %2133 = vmatprep.subr.mxu0 0.0
    %2134 = vmatpush1.msra.mxu0 0.0
    %2135 = vmatprep.subr.mxu0 0.0
    %2136 = vmatpush1.msra.mxu0 0.0
    %2137 = vmatprep.subr.mxu0 0.0
    %2138 = vmatpush1.msra.mxu0 0.0
    %2139 = vmatprep.subr.mxu0 0.0
    %2140 = vmatpush1.msra.mxu0 0.0
    %2141 = vmatprep.subr.mxu0 0.0
    %2142 = vmatpush1.msra.mxu0 0.0
    %2143 = vmatprep.subr.mxu0 0.0
    %2144 = vmatpush1.msra.mxu0 0.0
    %2145 = vmatprep.subr.mxu0 0.0
    %2146 = vmatpush1.msra.mxu0 0.0
    %2147 = vmatprep.subr.mxu0 0.0
    %2148 = vmatpush1.msra.mxu0 0.0
    %2149 = vmatprep.subr.mxu0 0.0
    %2150 = vmatpush1.msra.mxu0 0.0
    %2151 = vmatprep.subr.mxu0 0.0
    %2152 = vmatpush1.msra.mxu0 0.0
    %2153 = vmatprep.mubr.f32.mxu0 0.0
    %v2154 = vand.u32 %v1748, 4294901760
    %2155 = vmatmul.mubr.f32.gmra.mrb[0].mxu0 %v2154
    %v2156 = vpop.f32.mrb[0].mxu0
    %v2157 = vadd.f32 %v2074, %v2156
    %v2158 = vpop.f32.mrb[0].mxu0
    %2159 = vdwg.mxu0
    %2160 = vmatprep.subr.mxu0 0.0
    %v2161 = vand.u32 %v1736, 4294901760
    %2162 = vmatpush1.msra.mxu0 %v2161
    %2163 = vmatprep.subr.mxu0 0.0
    %v2164 = vand.u32 %v1737, 4294901760
    %2165 = vmatpush1.msra.mxu0 %v2164
    %2166 = vmatprep.subr.mxu0 0.0
    %v2167 = vand.u32 %v1738, 4294901760
    %2168 = vmatpush1.msra.mxu0 %v2167
    %2169 = vmatprep.subr.mxu0 0.0
    %v2170 = vand.u32 %v1739, 4294901760
    %2171 = vmatpush1.msra.mxu0 %v2170
    %2172 = vmatprep.subr.mxu0 0.0
    %2173 = vmatpush1.msra.mxu0 0.0
    %2174 = vmatprep.subr.mxu0 0.0
    %2175 = vmatpush1.msra.mxu0 0.0
    %2176 = vmatprep.subr.mxu0 0.0
    %2177 = vmatpush1.msra.mxu0 0.0
    %2178 = vmatprep.subr.mxu0 0.0
    %2179 = vmatpush1.msra.mxu0 0.0
    %2180 = vmatprep.subr.mxu0 0.0
    %2181 = vmatpush1.msra.mxu0 0.0
    %2182 = vmatprep.subr.mxu0 0.0
    %2183 = vmatpush1.msra.mxu0 0.0
    %2184 = vmatprep.subr.mxu0 0.0
    %2185 = vmatpush1.msra.mxu0 0.0
    %2186 = vmatprep.subr.mxu0 0.0
    %2187 = vmatpush1.msra.mxu0 0.0
    %2188 = vmatprep.subr.mxu0 0.0
    %2189 = vmatpush1.msra.mxu0 0.0
    %2190 = vmatprep.subr.mxu0 0.0
    %2191 = vmatpush1.msra.mxu0 0.0
    %2192 = vmatprep.subr.mxu0 0.0
    %2193 = vmatpush1.msra.mxu0 0.0
    %2194 = vmatprep.subr.mxu0 0.0
    %2195 = vmatpush1.msra.mxu0 0.0
    %2196 = vmatprep.subr.mxu0 0.0
    %2197 = vmatpush1.msra.mxu0 0.0
    %2198 = vmatprep.subr.mxu0 0.0
    %2199 = vmatpush1.msra.mxu0 0.0
    %2200 = vmatprep.subr.mxu0 0.0
    %2201 = vmatpush1.msra.mxu0 0.0
    %2202 = vmatprep.subr.mxu0 0.0
    %2203 = vmatpush1.msra.mxu0 0.0
    %2204 = vmatprep.subr.mxu0 0.0
    %2205 = vmatpush1.msra.mxu0 0.0
    %2206 = vmatprep.subr.mxu0 0.0
    %2207 = vmatpush1.msra.mxu0 0.0
    %2208 = vmatprep.subr.mxu0 0.0
    %2209 = vmatpush1.msra.mxu0 0.0
    %2210 = vmatprep.subr.mxu0 0.0
    %2211 = vmatpush1.msra.mxu0 0.0
    %2212 = vmatprep.subr.mxu0 0.0
    %2213 = vmatpush1.msra.mxu0 0.0
    %2214 = vmatprep.subr.mxu0 0.0
    %2215 = vmatpush1.msra.mxu0 0.0
    %2216 = vmatprep.subr.mxu0 0.0
    %2217 = vmatpush1.msra.mxu0 0.0
    %2218 = vmatprep.subr.mxu0 0.0
    %2219 = vmatpush1.msra.mxu0 0.0
    %2220 = vmatprep.subr.mxu0 0.0
    %2221 = vmatpush1.msra.mxu0 0.0
    %2222 = vmatprep.subr.mxu0 0.0
    %2223 = vmatpush1.msra.mxu0 0.0
    %2224 = vmatprep.subr.mxu0 0.0
    %2225 = vmatpush1.msra.mxu0 0.0
    %2226 = vmatprep.subr.mxu0 0.0
    %2227 = vmatpush1.msra.mxu0 0.0
    %2228 = vmatprep.mubr.f32.mxu0 0.0
    %v2229 = vand.u32 %v1748, 4294901760
    %2230 = vmatmul.mubr.f32.gmra.mrb[0].mxu0 %v2229
    %v2231 = vpop.f32.mrb[0].mxu0
    %v2232 = vadd.f32 %v2157, %v2231
    %v2233 = vpop.f32.mrb[0].mxu0
    %2234 = vdwg.mxu0
    %v2235 = vmax.f32 %v2232, 0.0
    %v2236 = vld [vmem:[%s9] sm:$0xff]
    %v2237 = vld [vmem:[%s9 + $0x8] sm:$0xff]
    %v2238 = vld [vmem:[%s9 + $0x10] sm:$0xff]
    %v2239 = vld [vmem:[%s9 + $0x18] sm:$0xff]
    %v2240 = vld [vmem:[%s10] sm:$0x1]
    %v2242 = vlaneseq
    %v2243 = vshrl.u32 %v2242, 7
    %v2244 = vsub.s32 0, %v2243
    %v2245 = vrot.slane %v2240, %v2244
    %v2248 = vsel %vm51, %v2235, 0
    %2250 = vmatprep.subr.mxu0 0.0
    %v2251 = vand.u32 %v2236, 4294901760
    %2252 = vmatpush1.msra.mxu0 %v2251
    %2253 = vmatprep.subr.mxu0 0.0
    %v2254 = vand.u32 %v2237, 4294901760
    %2255 = vmatpush1.msra.mxu0 %v2254
    %2256 = vmatprep.subr.mxu0 0.0
    %v2257 = vand.u32 %v2238, 4294901760
    %2258 = vmatpush1.msra.mxu0 %v2257
    %2259 = vmatprep.subr.mxu0 0.0
    %v2260 = vand.u32 %v2239, 4294901760
    %2261 = vmatpush1.msra.mxu0 %v2260
    %2262 = vmatprep.subr.mxu0 0.0
    %2263 = vmatpush1.msra.mxu0 0.0
    %2264 = vmatprep.subr.mxu0 0.0
    %2265 = vmatpush1.msra.mxu0 0.0
    %2266 = vmatprep.subr.mxu0 0.0
    %2267 = vmatpush1.msra.mxu0 0.0
    %2268 = vmatprep.subr.mxu0 0.0
    %2269 = vmatpush1.msra.mxu0 0.0
    %2270 = vmatprep.subr.mxu0 0.0
    %2271 = vmatpush1.msra.mxu0 0.0
    %2272 = vmatprep.subr.mxu0 0.0
    %2273 = vmatpush1.msra.mxu0 0.0
    %2274 = vmatprep.subr.mxu0 0.0
    %2275 = vmatpush1.msra.mxu0 0.0
    %2276 = vmatprep.subr.mxu0 0.0
    %2277 = vmatpush1.msra.mxu0 0.0
    %2278 = vmatprep.subr.mxu0 0.0
    %2279 = vmatpush1.msra.mxu0 0.0
    %2280 = vmatprep.subr.mxu0 0.0
    %2281 = vmatpush1.msra.mxu0 0.0
    %2282 = vmatprep.subr.mxu0 0.0
    %2283 = vmatpush1.msra.mxu0 0.0
    %2284 = vmatprep.subr.mxu0 0.0
    %2285 = vmatpush1.msra.mxu0 0.0
    %2286 = vmatprep.subr.mxu0 0.0
    %2287 = vmatpush1.msra.mxu0 0.0
    %2288 = vmatprep.subr.mxu0 0.0
    %2289 = vmatpush1.msra.mxu0 0.0
    %2290 = vmatprep.subr.mxu0 0.0
    %2291 = vmatpush1.msra.mxu0 0.0
    %2292 = vmatprep.subr.mxu0 0.0
    %2293 = vmatpush1.msra.mxu0 0.0
    %2294 = vmatprep.subr.mxu0 0.0
    %2295 = vmatpush1.msra.mxu0 0.0
    %2296 = vmatprep.subr.mxu0 0.0
    %2297 = vmatpush1.msra.mxu0 0.0
    %2298 = vmatprep.subr.mxu0 0.0
    %2299 = vmatpush1.msra.mxu0 0.0
    %2300 = vmatprep.subr.mxu0 0.0
    %2301 = vmatpush1.msra.mxu0 0.0
    %2302 = vmatprep.subr.mxu0 0.0
    %2303 = vmatpush1.msra.mxu0 0.0
    %2304 = vmatprep.subr.mxu0 0.0
    %2305 = vmatpush1.msra.mxu0 0.0
    %2306 = vmatprep.subr.mxu0 0.0
    %2307 = vmatpush1.msra.mxu0 0.0
    %2308 = vmatprep.subr.mxu0 0.0
    %2309 = vmatpush1.msra.mxu0 0.0
    %2310 = vmatprep.subr.mxu0 0.0
    %2311 = vmatpush1.msra.mxu0 0.0
    %2312 = vmatprep.subr.mxu0 0.0
    %2313 = vmatpush1.msra.mxu0 0.0
    %2314 = vmatprep.subr.mxu0 0.0
    %2315 = vmatpush1.msra.mxu0 0.0
    %2316 = vmatprep.subr.mxu0 0.0
    %2317 = vmatpush1.msra.mxu0 0.0
    %2318 = vmatprep.mubr.f32.mxu0 0.0
    %v2319 = vand.u32 %v2248, 4294901760
    %v2320 = vsub.f32 %v2248, %v2319
    %v2321 = vand.u32 %v2320, 4294901760
    %v2322 = vsub.f32 %v2320, %v2321
    %v2323 = vand.u32 %v2322, 4294901760
    %2324 = vmatmul.mubr.f32.gmra.mrb[0].mxu0 %v2323
    %v2325 = vpop.f32.mrb[0].mxu0
    %v2326 = vadd.f32 %v2245, %v2325
    %v2327 = vpop.f32.mrb[0].mxu0
    %2328 = vdwg.mxu0
    %2329 = vmatprep.subr.mxu0 0.0
    %v2330 = vand.u32 %v2236, 4294901760
    %v2331 = vsub.f32 %v2236, %v2330
    %v2332 = vand.u32 %v2331, 4294901760
    %v2333 = vsub.f32 %v2331, %v2332
    %v2334 = vand.u32 %v2333, 4294901760
    %2335 = vmatpush1.msra.mxu0 %v2334
    %2336 = vmatprep.subr.mxu0 0.0
    %v2337 = vand.u32 %v2237, 4294901760
    %v2338 = vsub.f32 %v2237, %v2337
    %v2339 = vand.u32 %v2338, 4294901760
    %v2340 = vsub.f32 %v2338, %v2339
    %v2341 = vand.u32 %v2340, 4294901760
    %2342 = vmatpush1.msra.mxu0 %v2341
    %2343 = vmatprep.subr.mxu0 0.0
    %v2344 = vand.u32 %v2238, 4294901760
    %v2345 = vsub.f32 %v2238, %v2344
    %v2346 = vand.u32 %v2345, 4294901760
    %v2347 = vsub.f32 %v2345, %v2346
    %v2348 = vand.u32 %v2347, 4294901760
    %2349 = vmatpush1.msra.mxu0 %v2348
    %2350 = vmatprep.subr.mxu0 0.0
    %v2351 = vand.u32 %v2239, 4294901760
    %v2352 = vsub.f32 %v2239, %v2351
    %v2353 = vand.u32 %v2352, 4294901760
    %v2354 = vsub.f32 %v2352, %v2353
    %v2355 = vand.u32 %v2354, 4294901760
    %2356 = vmatpush1.msra.mxu0 %v2355
    %2357 = vmatprep.subr.mxu0 0.0
    %2358 = vmatpush1.msra.mxu0 0.0
    %2359 = vmatprep.subr.mxu0 0.0
    %2360 = vmatpush1.msra.mxu0 0.0
    %2361 = vmatprep.subr.mxu0 0.0
    %2362 = vmatpush1.msra.mxu0 0.0
    %2363 = vmatprep.subr.mxu0 0.0
    %2364 = vmatpush1.msra.mxu0 0.0
    %2365 = vmatprep.subr.mxu0 0.0
    %2366 = vmatpush1.msra.mxu0 0.0
    %2367 = vmatprep.subr.mxu0 0.0
    %2368 = vmatpush1.msra.mxu0 0.0
    %2369 = vmatprep.subr.mxu0 0.0
    %2370 = vmatpush1.msra.mxu0 0.0
    %2371 = vmatprep.subr.mxu0 0.0
    %2372 = vmatpush1.msra.mxu0 0.0
    %2373 = vmatprep.subr.mxu0 0.0
    %2374 = vmatpush1.msra.mxu0 0.0
    %2375 = vmatprep.subr.mxu0 0.0
    %2376 = vmatpush1.msra.mxu0 0.0
    %2377 = vmatprep.subr.mxu0 0.0
    %2378 = vmatpush1.msra.mxu0 0.0
    %2379 = vmatprep.subr.mxu0 0.0
    %2380 = vmatpush1.msra.mxu0 0.0
    %2381 = vmatprep.subr.mxu0 0.0
    %2382 = vmatpush1.msra.mxu0 0.0
    %2383 = vmatprep.subr.mxu0 0.0
    %2384 = vmatpush1.msra.mxu0 0.0
    %2385 = vmatprep.subr.mxu0 0.0
    %2386 = vmatpush1.msra.mxu0 0.0
    %2387 = vmatprep.subr.mxu0 0.0
    %2388 = vmatpush1.msra.mxu0 0.0
    %2389 = vmatprep.subr.mxu0 0.0
    %2390 = vmatpush1.msra.mxu0 0.0
    %2391 = vmatprep.subr.mxu0 0.0
    %2392 = vmatpush1.msra.mxu0 0.0
    %2393 = vmatprep.subr.mxu0 0.0
    %2394 = vmatpush1.msra.mxu0 0.0
    %2395 = vmatprep.subr.mxu0 0.0
    %2396 = vmatpush1.msra.mxu0 0.0
    %2397 = vmatprep.subr.mxu0 0.0
    %2398 = vmatpush1.msra.mxu0 0.0
    %2399 = vmatprep.subr.mxu0 0.0
    %2400 = vmatpush1.msra.mxu0 0.0
    %2401 = vmatprep.subr.mxu0 0.0
    %2402 = vmatpush1.msra.mxu0 0.0
    %2403 = vmatprep.subr.mxu0 0.0
    %2404 = vmatpush1.msra.mxu0 0.0
    %2405 = vmatprep.subr.mxu0 0.0
    %2406 = vmatpush1.msra.mxu0 0.0
    %2407 = vmatprep.subr.mxu0 0.0
    %2408 = vmatpush1.msra.mxu0 0.0
    %2409 = vmatprep.subr.mxu0 0.0
    %2410 = vmatpush1.msra.mxu0 0.0
    %2411 = vmatprep.subr.mxu0 0.0
    %2412 = vmatpush1.msra.mxu0 0.0
    %2413 = vmatprep.mubr.f32.mxu0 0.0
    %v2414 = vand.u32 %v2248, 4294901760
    %2415 = vmatmul.mubr.f32.gmra.mrb[0].mxu0 %v2414
    %v2416 = vpop.f32.mrb[0].mxu0
    %v2417 = vadd.f32 %v2326, %v2416
    %v2418 = vpop.f32.mrb[0].mxu0
    %2419 = vdwg.mxu0
    %2420 = vmatprep.subr.mxu0 0.0
    %v2421 = vand.u32 %v2236, 4294901760
    %v2422 = vsub.f32 %v2236, %v2421
    %2423 = vmatpush1.msra.mxu0 %v2422
    %2424 = vmatprep.subr.mxu0 0.0
    %v2425 = vand.u32 %v2237, 4294901760
    %v2426 = vsub.f32 %v2237, %v2425
    %2427 = vmatpush1.msra.mxu0 %v2426
    %2428 = vmatprep.subr.mxu0 0.0
    %v2429 = vand.u32 %v2238, 4294901760
    %v2430 = vsub.f32 %v2238, %v2429
    %2431 = vmatpush1.msra.mxu0 %v2430
    %2432 = vmatprep.subr.mxu0 0.0
    %v2433 = vand.u32 %v2239, 4294901760
    %v2434 = vsub.f32 %v2239, %v2433
    %2435 = vmatpush1.msra.mxu0 %v2434
    %2436 = vmatprep.subr.mxu0 0.0
    %2437 = vmatpush1.msra.mxu0 0.0
    %2438 = vmatprep.subr.mxu0 0.0
    %2439 = vmatpush1.msra.mxu0 0.0
    %2440 = vmatprep.subr.mxu0 0.0
    %2441 = vmatpush1.msra.mxu0 0.0
    %2442 = vmatprep.subr.mxu0 0.0
    %2443 = vmatpush1.msra.mxu0 0.0
    %2444 = vmatprep.subr.mxu0 0.0
    %2445 = vmatpush1.msra.mxu0 0.0
    %2446 = vmatprep.subr.mxu0 0.0
    %2447 = vmatpush1.msra.mxu0 0.0
    %2448 = vmatprep.subr.mxu0 0.0
    %2449 = vmatpush1.msra.mxu0 0.0
    %2450 = vmatprep.subr.mxu0 0.0
    %2451 = vmatpush1.msra.mxu0 0.0
    %2452 = vmatprep.subr.mxu0 0.0
    %2453 = vmatpush1.msra.mxu0 0.0
    %2454 = vmatprep.subr.mxu0 0.0
    %2455 = vmatpush1.msra.mxu0 0.0
    %2456 = vmatprep.subr.mxu0 0.0
    %2457 = vmatpush1.msra.mxu0 0.0
    %2458 = vmatprep.subr.mxu0 0.0
    %2459 = vmatpush1.msra.mxu0 0.0
    %2460 = vmatprep.subr.mxu0 0.0
    %2461 = vmatpush1.msra.mxu0 0.0
    %2462 = vmatprep.subr.mxu0 0.0
    %2463 = vmatpush1.msra.mxu0 0.0
    %2464 = vmatprep.subr.mxu0 0.0
    %2465 = vmatpush1.msra.mxu0 0.0
    %2466 = vmatprep.subr.mxu0 0.0
    %2467 = vmatpush1.msra.mxu0 0.0
    %2468 = vmatprep.subr.mxu0 0.0
    %2469 = vmatpush1.msra.mxu0 0.0
    %2470 = vmatprep.subr.mxu0 0.0
    %2471 = vmatpush1.msra.mxu0 0.0
    %2472 = vmatprep.subr.mxu0 0.0
    %2473 = vmatpush1.msra.mxu0 0.0
    %2474 = vmatprep.subr.mxu0 0.0
    %2475 = vmatpush1.msra.mxu0 0.0
    %2476 = vmatprep.subr.mxu0 0.0
    %2477 = vmatpush1.msra.mxu0 0.0
    %2478 = vmatprep.subr.mxu0 0.0
    %2479 = vmatpush1.msra.mxu0 0.0
    %2480 = vmatprep.subr.mxu0 0.0
    %2481 = vmatpush1.msra.mxu0 0.0
    %2482 = vmatprep.subr.mxu0 0.0
    %2483 = vmatpush1.msra.mxu0 0.0
    %2484 = vmatprep.subr.mxu0 0.0
    %2485 = vmatpush1.msra.mxu0 0.0
    %2486 = vmatprep.subr.mxu0 0.0
    %2487 = vmatpush1.msra.mxu0 0.0
    %2488 = vmatprep.subr.mxu0 0.0
    %2489 = vmatpush1.msra.mxu0 0.0
    %2490 = vmatprep.subr.mxu0 0.0
    %2491 = vmatpush1.msra.mxu0 0.0
    %2492 = vmatprep.mubr.f32.mxu0 0.0
    %v2493 = vand.u32 %v2248, 4294901760
    %v2494 = vsub.f32 %v2248, %v2493
    %2495 = vmatmul.mubr.f32.gmra.mrb[0].mxu0 %v2494
    %v2496 = vpop.f32.mrb[0].mxu0
    %v2497 = vadd.f32 %v2417, %v2496
    %v2498 = vpop.f32.mrb[0].mxu0
    %2499 = vdwg.mxu0
    %2500 = vmatprep.subr.mxu0 0.0
    %v2501 = vand.u32 %v2236, 4294901760
    %2502 = vmatpush1.msra.mxu0 %v2501
    %2503 = vmatprep.subr.mxu0 0.0
    %v2504 = vand.u32 %v2237, 4294901760
    %2505 = vmatpush1.msra.mxu0 %v2504
    %2506 = vmatprep.subr.mxu0 0.0
    %v2507 = vand.u32 %v2238, 4294901760
    %2508 = vmatpush1.msra.mxu0 %v2507
    %2509 = vmatprep.subr.mxu0 0.0
    %v2510 = vand.u32 %v2239, 4294901760
    %2511 = vmatpush1.msra.mxu0 %v2510
    %2512 = vmatprep.subr.mxu0 0.0
    %2513 = vmatpush1.msra.mxu0 0.0
    %2514 = vmatprep.subr.mxu0 0.0
    %2515 = vmatpush1.msra.mxu0 0.0
    %2516 = vmatprep.subr.mxu0 0.0
    %2517 = vmatpush1.msra.mxu0 0.0
    %2518 = vmatprep.subr.mxu0 0.0
    %2519 = vmatpush1.msra.mxu0 0.0
    %2520 = vmatprep.subr.mxu0 0.0
    %2521 = vmatpush1.msra.mxu0 0.0
    %2522 = vmatprep.subr.mxu0 0.0
    %2523 = vmatpush1.msra.mxu0 0.0
    %2524 = vmatprep.subr.mxu0 0.0
    %2525 = vmatpush1.msra.mxu0 0.0
    %2526 = vmatprep.subr.mxu0 0.0
    %2527 = vmatpush1.msra.mxu0 0.0
    %2528 = vmatprep.subr.mxu0 0.0
    %2529 = vmatpush1.msra.mxu0 0.0
    %2530 = vmatprep.subr.mxu0 0.0
    %2531 = vmatpush1.msra.mxu0 0.0
    %2532 = vmatprep.subr.mxu0 0.0
    %2533 = vmatpush1.msra.mxu0 0.0
    %2534 = vmatprep.subr.mxu0 0.0
    %2535 = vmatpush1.msra.mxu0 0.0
    %2536 = vmatprep.subr.mxu0 0.0
    %2537 = vmatpush1.msra.mxu0 0.0
    %2538 = vmatprep.subr.mxu0 0.0
    %2539 = vmatpush1.msra.mxu0 0.0
    %2540 = vmatprep.subr.mxu0 0.0
    %2541 = vmatpush1.msra.mxu0 0.0
    %2542 = vmatprep.subr.mxu0 0.0
    %2543 = vmatpush1.msra.mxu0 0.0
    %2544 = vmatprep.subr.mxu0 0.0
    %2545 = vmatpush1.msra.mxu0 0.0
    %2546 = vmatprep.subr.mxu0 0.0
    %2547 = vmatpush1.msra.mxu0 0.0
    %2548 = vmatprep.subr.mxu0 0.0
    %2549 = vmatpush1.msra.mxu0 0.0
    %2550 = vmatprep.subr.mxu0 0.0
    %2551 = vmatpush1.msra.mxu0 0.0
    %2552 = vmatprep.subr.mxu0 0.0
    %2553 = vmatpush1.msra.mxu0 0.0
    %2554 = vmatprep.subr.mxu0 0.0
    %2555 = vmatpush1.msra.mxu0 0.0
    %2556 = vmatprep.subr.mxu0 0.0
    %2557 = vmatpush1.msra.mxu0 0.0
    %2558 = vmatprep.subr.mxu0 0.0
    %2559 = vmatpush1.msra.mxu0 0.0
    %2560 = vmatprep.subr.mxu0 0.0
    %2561 = vmatpush1.msra.mxu0 0.0
    %2562 = vmatprep.subr.mxu0 0.0
    %2563 = vmatpush1.msra.mxu0 0.0
    %2564 = vmatprep.subr.mxu0 0.0
    %2565 = vmatpush1.msra.mxu0 0.0
    %2566 = vmatprep.subr.mxu0 0.0
    %2567 = vmatpush1.msra.mxu0 0.0
    %2568 = vmatprep.mubr.f32.mxu0 0.0
    %v2569 = vand.u32 %v2248, 4294901760
    %v2570 = vsub.f32 %v2248, %v2569
    %v2571 = vand.u32 %v2570, 4294901760
    %2572 = vmatmul.mubr.f32.gmra.mrb[0].mxu0 %v2571
    %v2573 = vpop.f32.mrb[0].mxu0
    %v2574 = vadd.f32 %v2497, %v2573
    %v2575 = vpop.f32.mrb[0].mxu0
    %2576 = vdwg.mxu0
    %2577 = vmatprep.subr.mxu0 0.0
    %v2578 = vand.u32 %v2236, 4294901760
    %v2579 = vsub.f32 %v2236, %v2578
    %v2580 = vand.u32 %v2579, 4294901760
    %2581 = vmatpush1.msra.mxu0 %v2580
    %2582 = vmatprep.subr.mxu0 0.0
    %v2583 = vand.u32 %v2237, 4294901760
    %v2584 = vsub.f32 %v2237, %v2583
    %v2585 = vand.u32 %v2584, 4294901760
    %2586 = vmatpush1.msra.mxu0 %v2585
    %2587 = vmatprep.subr.mxu0 0.0
    %v2588 = vand.u32 %v2238, 4294901760
    %v2589 = vsub.f32 %v2238, %v2588
    %v2590 = vand.u32 %v2589, 4294901760
    %2591 = vmatpush1.msra.mxu0 %v2590
    %2592 = vmatprep.subr.mxu0 0.0
    %v2593 = vand.u32 %v2239, 4294901760
    %v2594 = vsub.f32 %v2239, %v2593
    %v2595 = vand.u32 %v2594, 4294901760
    %2596 = vmatpush1.msra.mxu0 %v2595
    %2597 = vmatprep.subr.mxu0 0.0
    %2598 = vmatpush1.msra.mxu0 0.0
    %2599 = vmatprep.subr.mxu0 0.0
    %2600 = vmatpush1.msra.mxu0 0.0
    %2601 = vmatprep.subr.mxu0 0.0
    %2602 = vmatpush1.msra.mxu0 0.0
    %2603 = vmatprep.subr.mxu0 0.0
    %2604 = vmatpush1.msra.mxu0 0.0
    %2605 = vmatprep.subr.mxu0 0.0
    %2606 = vmatpush1.msra.mxu0 0.0
    %2607 = vmatprep.subr.mxu0 0.0
    %2608 = vmatpush1.msra.mxu0 0.0
    %2609 = vmatprep.subr.mxu0 0.0
    %2610 = vmatpush1.msra.mxu0 0.0
    %2611 = vmatprep.subr.mxu0 0.0
    %2612 = vmatpush1.msra.mxu0 0.0
    %2613 = vmatprep.subr.mxu0 0.0
    %2614 = vmatpush1.msra.mxu0 0.0
    %2615 = vmatprep.subr.mxu0 0.0
    %2616 = vmatpush1.msra.mxu0 0.0
    %2617 = vmatprep.subr.mxu0 0.0
    %2618 = vmatpush1.msra.mxu0 0.0
    %2619 = vmatprep.subr.mxu0 0.0
    %2620 = vmatpush1.msra.mxu0 0.0
    %2621 = vmatprep.subr.mxu0 0.0
    %2622 = vmatpush1.msra.mxu0 0.0
    %2623 = vmatprep.subr.mxu0 0.0
    %2624 = vmatpush1.msra.mxu0 0.0
    %2625 = vmatprep.subr.mxu0 0.0
    %2626 = vmatpush1.msra.mxu0 0.0
    %2627 = vmatprep.subr.mxu0 0.0
    %2628 = vmatpush1.msra.mxu0 0.0
    %2629 = vmatprep.subr.mxu0 0.0
    %2630 = vmatpush1.msra.mxu0 0.0
    %2631 = vmatprep.subr.mxu0 0.0
    %2632 = vmatpush1.msra.mxu0 0.0
    %2633 = vmatprep.subr.mxu0 0.0
    %2634 = vmatpush1.msra.mxu0 0.0
    %2635 = vmatprep.subr.mxu0 0.0
    %2636 = vmatpush1.msra.mxu0 0.0
    %2637 = vmatprep.subr.mxu0 0.0
    %2638 = vmatpush1.msra.mxu0 0.0
    %2639 = vmatprep.subr.mxu0 0.0
    %2640 = vmatpush1.msra.mxu0 0.0
    %2641 = vmatprep.subr.mxu0 0.0
    %2642 = vmatpush1.msra.mxu0 0.0
    %2643 = vmatprep.subr.mxu0 0.0
    %2644 = vmatpush1.msra.mxu0 0.0
    %2645 = vmatprep.subr.mxu0 0.0
    %2646 = vmatpush1.msra.mxu0 0.0
    %2647 = vmatprep.subr.mxu0 0.0
    %2648 = vmatpush1.msra.mxu0 0.0
    %2649 = vmatprep.subr.mxu0 0.0
    %2650 = vmatpush1.msra.mxu0 0.0
    %2651 = vmatprep.subr.mxu0 0.0
    %2652 = vmatpush1.msra.mxu0 0.0
    %2653 = vmatprep.mubr.f32.mxu0 0.0
    %v2654 = vand.u32 %v2248, 4294901760
    %2655 = vmatmul.mubr.f32.gmra.mrb[0].mxu0 %v2654
    %v2656 = vpop.f32.mrb[0].mxu0
    %v2657 = vadd.f32 %v2574, %v2656
    %v2658 = vpop.f32.mrb[0].mxu0
    %2659 = vdwg.mxu0
    %2660 = vmatprep.subr.mxu0 0.0
    %v2661 = vand.u32 %v2236, 4294901760
    %2662 = vmatpush1.msra.mxu0 %v2661
    %2663 = vmatprep.subr.mxu0 0.0
    %v2664 = vand.u32 %v2237, 4294901760
    %2665 = vmatpush1.msra.mxu0 %v2664
    %2666 = vmatprep.subr.mxu0 0.0
    %v2667 = vand.u32 %v2238, 4294901760
    %2668 = vmatpush1.msra.mxu0 %v2667
    %2669 = vmatprep.subr.mxu0 0.0
    %v2670 = vand.u32 %v2239, 4294901760
    %2671 = vmatpush1.msra.mxu0 %v2670
    %2672 = vmatprep.subr.mxu0 0.0
    %2673 = vmatpush1.msra.mxu0 0.0
    %2674 = vmatprep.subr.mxu0 0.0
    %2675 = vmatpush1.msra.mxu0 0.0
    %2676 = vmatprep.subr.mxu0 0.0
    %2677 = vmatpush1.msra.mxu0 0.0
    %2678 = vmatprep.subr.mxu0 0.0
    %2679 = vmatpush1.msra.mxu0 0.0
    %2680 = vmatprep.subr.mxu0 0.0
    %2681 = vmatpush1.msra.mxu0 0.0
    %2682 = vmatprep.subr.mxu0 0.0
    %2683 = vmatpush1.msra.mxu0 0.0
    %2684 = vmatprep.subr.mxu0 0.0
    %2685 = vmatpush1.msra.mxu0 0.0
    %2686 = vmatprep.subr.mxu0 0.0
    %2687 = vmatpush1.msra.mxu0 0.0
    %2688 = vmatprep.subr.mxu0 0.0
    %2689 = vmatpush1.msra.mxu0 0.0
    %2690 = vmatprep.subr.mxu0 0.0
    %2691 = vmatpush1.msra.mxu0 0.0
    %2692 = vmatprep.subr.mxu0 0.0
    %2693 = vmatpush1.msra.mxu0 0.0
    %2694 = vmatprep.subr.mxu0 0.0
    %2695 = vmatpush1.msra.mxu0 0.0
    %2696 = vmatprep.subr.mxu0 0.0
    %2697 = vmatpush1.msra.mxu0 0.0
    %2698 = vmatprep.subr.mxu0 0.0
    %2699 = vmatpush1.msra.mxu0 0.0
    %2700 = vmatprep.subr.mxu0 0.0
    %2701 = vmatpush1.msra.mxu0 0.0
    %2702 = vmatprep.subr.mxu0 0.0
    %2703 = vmatpush1.msra.mxu0 0.0
    %2704 = vmatprep.subr.mxu0 0.0
    %2705 = vmatpush1.msra.mxu0 0.0
    %2706 = vmatprep.subr.mxu0 0.0
    %2707 = vmatpush1.msra.mxu0 0.0
    %2708 = vmatprep.subr.mxu0 0.0
    %2709 = vmatpush1.msra.mxu0 0.0
    %2710 = vmatprep.subr.mxu0 0.0
    %2711 = vmatpush1.msra.mxu0 0.0
    %2712 = vmatprep.subr.mxu0 0.0
    %2713 = vmatpush1.msra.mxu0 0.0
    %2714 = vmatprep.subr.mxu0 0.0
    %2715 = vmatpush1.msra.mxu0 0.0
    %2716 = vmatprep.subr.mxu0 0.0
    %2717 = vmatpush1.msra.mxu0 0.0
    %2718 = vmatprep.subr.mxu0 0.0
    %2719 = vmatpush1.msra.mxu0 0.0
    %2720 = vmatprep.subr.mxu0 0.0
    %2721 = vmatpush1.msra.mxu0 0.0
    %2722 = vmatprep.subr.mxu0 0.0
    %2723 = vmatpush1.msra.mxu0 0.0
    %2724 = vmatprep.subr.mxu0 0.0
    %2725 = vmatpush1.msra.mxu0 0.0
    %2726 = vmatprep.subr.mxu0 0.0
    %2727 = vmatpush1.msra.mxu0 0.0
    %2728 = vmatprep.mubr.f32.mxu0 0.0
    %v2729 = vand.u32 %v2248, 4294901760
    %2730 = vmatmul.mubr.f32.gmra.mrb[0].mxu0 %v2729
    %v2731 = vpop.f32.mrb[0].mxu0
    %v2732 = vadd.f32 %v2657, %v2731
    %v2733 = vpop.f32.mrb[0].mxu0
    %2734 = vdwg.mxu0
    %v2735 = vmax.f32 %v2732, 0.0
    %2736 = vst [vmem:[#allocation2] sm:$0xff] %v2735
    // Predicated region
    $region46: #{tpu_custom_call.1} parent=1 // pred_check
      _
    $region47: #{tpu_custom_call.1} parent=1 // pred_check_branch
      %2738 = sbr.rel (0) target = $region49
    $region48: #{tpu_custom_call.1} parent=1 // pred_region
      %s2740 = ssub.s32 128, 128
      %2741 = vsyncadd [#allocation3], %s2740
      %s2743 = sshll.u32 [#allocation2], 4
      %s2744 = int_to_ptr.vmem [resolvable:$true] %s2743
      %2746 = dma.vmem_to_hbm [thread:$0]  %s2744, 128, %s11, [#allocation3]
    $region49: #{tpu_custom_call.1} parent=1 // pred_fallthru
      _
    // Predicated region
    $region50: #{tpu_custom_call.1} parent=1 // pred_check
      _
    $region51: #{tpu_custom_call.1} parent=1 // pred_check_branch
      %2748 = sbr.rel (0) target = $region53
    $region52: #{tpu_custom_call.1} parent=1 // pred_region
      %2749 = dma.done [#allocation3], 128
    $region53: #{tpu_custom_call.1} parent=1 // pred_fallthru
      _
    %2750 = vsyncpa [#allocation3], 1

</llo_original>
